<compile_context>
chip_gen: v6e
topology: v6e:2x2x1
jax: 0.10.0
libtpu: 0.0.40
codegen_flags: <defaults>
</compile_context>

<pallas_src>
import functools

import jax
import jax.numpy as jnp
import numpy as np
from jax.experimental import pallas as pl
from jax.experimental.pallas import tpu as pltpu


# ----------------------------------------------------------------------------
# Fused kernel: one grid step = (batch chunk c, layer l).
# ----------------------------------------------------------------------------
def text_encoder_kernel(
    x_ref,       # (Bc, S, D)        input activations (read at l == 0 only)
    wqkv_ref,    # (D, 3D)  bf16     fused [Wq | Wk | Wv] (pre-transposed)
    wo_ref,      # (D, D)   bf16     output projection (pre-transposed)
    w1_ref,      # (D, F)   bf16     FFN linear1 (pre-transposed)
    w2_ref,      # (F, D)   bf16     FFN linear2 (pre-transposed)
    svec_ref,    # (8, Wmax) f32     packed [bqkv | b1 | bo | ln1g | ln1b | b2 | ln2g | ln2b]
    o_ref,       # (Bc, S, D)        output (written at the last layer only)
    x_sc,        # (Bc*S, D) f32     VMEM scratch carrying x across the layer axis
    *, nheads, eps=1e-5,
):
    l = pl.program_id(1)
    Bc, S, D = x_ref.shape
    F = w1_ref.shape[1]
    H = nheads
    Dh = D // H
    scale = 1.0 / float(np.sqrt(Dh))

    @pl.when(l == 0)
    def _init():
        x_sc[...] = x_ref[...].reshape(Bc * S, D).astype(jnp.float32)

    x = x_sc[...]                                            # (Bc*S, D) f32

    sv = svec_ref[...].astype(jnp.float32)                   # (8, Wmax)
    bqkv = sv[0:1, :3 * D]
    b1   = sv[1:2, :F]
    bo   = sv[2:3, :D]
    ln1g = sv[3:4, :D]
    ln1b = sv[4:5, :D]
    b2   = sv[5:6, :D]
    ln2g = sv[6:7, :D]
    ln2b = sv[7:8, :D]

    # --- fused QKV projection: one full-width bf16 MXU matmul, f32 accumulation ---
    qkv = jnp.dot(x.astype(jnp.bfloat16), wqkv_ref[...],
                  preferred_element_type=jnp.float32) + bqkv      # (Bc*S, 3D)
    qkv = qkv.reshape(Bc, S, 3 * D)

    # --- attention core per head (unmasked; activation-only, f32) ---
    ctx_heads = []
    for h in range(H):
        qh = qkv[:, :, h * Dh:(h + 1) * Dh] * scale               # (Bc, S, Dh)
        kh = qkv[:, :, D + h * Dh:D + (h + 1) * Dh]
        vh = qkv[:, :, 2 * D + h * Dh:2 * D + (h + 1) * Dh]
        s = jnp.einsum("bqd,bkd->bqk", qh, kh,
                       preferred_element_type=jnp.float32)        # (Bc, S, S)
        s = s - jnp.max(s, axis=-1, keepdims=True)
        p = jnp.exp(s)
        p = p / jnp.sum(p, axis=-1, keepdims=True)                # exact reciprocal
        ctx_heads.append(jnp.einsum("bqk,bkd->bqd", p, vh,
                                    preferred_element_type=jnp.float32))
    ctx = jnp.concatenate(ctx_heads, axis=-1).reshape(Bc * S, D)  # head merge

    # --- output projection (full-width) + residual + LayerNorm1 ---
    attn = jnp.dot(ctx.astype(jnp.bfloat16), wo_ref[...],
                   preferred_element_type=jnp.float32) + bo
    y = x + attn
    mu = jnp.mean(y, axis=-1, keepdims=True)
    var = jnp.mean((y - mu) ** 2, axis=-1, keepdims=True)
    y = (y - mu) * jax.lax.rsqrt(var + eps) * ln1g + ln1b

    # --- FFN: linear1 -> relu -> linear2 ---
    h1 = jnp.dot(y.astype(jnp.bfloat16), w1_ref[...],
                 preferred_element_type=jnp.float32) + b1
    h1 = jnp.maximum(h1, 0.0)
    h2 = jnp.dot(h1.astype(jnp.bfloat16), w2_ref[...],
                 preferred_element_type=jnp.float32) + b2

    # --- residual + LayerNorm2 ---
    z = y + h2
    mu2 = jnp.mean(z, axis=-1, keepdims=True)
    var2 = jnp.mean((z - mu2) ** 2, axis=-1, keepdims=True)
    z = (z - mu2) * jax.lax.rsqrt(var2 + eps) * ln2g + ln2b

    x_sc[...] = z                                             # carry to next layer

    @pl.when(l == pl.num_programs(1) - 1)
    def _store():
        o_ref[...] = z.reshape(Bc, S, D).astype(o_ref.dtype)


# ----------------------------------------------------------------------------
# Wrapper: single pallas_call for the whole TextTransformer forward.
# ----------------------------------------------------------------------------
def text_transformer_forward(memory_text, text_attention_mask, packed, nheads,
                             *, batch_chunks=1):
    # text_attention_mask accepted for API parity but unused (see header note).
    del text_attention_mask
    B, S, D = memory_text.shape
    assert D % nheads == 0
    assert B % batch_chunks == 0
    Bc = B // batch_chunks
    L = packed["wqkv"].shape[0]
    F = packed["w1"].shape[2]
    Wmax = packed["svec"].shape[2]

    kernel = functools.partial(text_encoder_kernel, nheads=nheads)

    in_specs = [
        pl.BlockSpec((Bc, S, D), lambda c, l: (c, 0, 0)),          # x (fetched once/chunk)
        pl.BlockSpec((None, D, 3 * D), lambda c, l: (l, 0, 0)),    # wqkv (streamed per layer)
        pl.BlockSpec((None, D, D), lambda c, l: (l, 0, 0)),        # wo
        pl.BlockSpec((None, D, F), lambda c, l: (l, 0, 0)),        # w1
        pl.BlockSpec((None, F, D), lambda c, l: (l, 0, 0)),        # w2
        pl.BlockSpec((None, 8, Wmax), lambda c, l: (l, 0, 0)),     # packed small vectors
    ]
    out_specs = pl.BlockSpec((Bc, S, D), lambda c, l: (c, 0, 0))

    # Explicit VMEM budget: double-buffered streamed layer slab + I/O blocks + activations.
    w_item = packed["wqkv"].dtype.itemsize
    x_item = memory_text.dtype.itemsize
    layer_slab = (D * 3 * D + D * D + 2 * D * F) * w_item + 8 * Wmax * 4
    io_slab = 2 * Bc * S * D * x_item
    act_work = Bc * S * (4 * D + 3 * D + F) * 4 + nheads * Bc * S * S * 4
    vmem_limit = int(min(128 * 1024 * 1024,
                         max(32 * 1024 * 1024,
                             2 * (layer_slab + io_slab) + 2 * act_work + (4 << 20))))

    return pl.pallas_call(
        kernel,
        out_shape=jax.ShapeDtypeStruct((B, S, D), memory_text.dtype),
        grid=(batch_chunks, L),
        in_specs=in_specs,
        out_specs=out_specs,
        scratch_shapes=[pltpu.VMEM((Bc * S, D), jnp.float32)],
        compiler_params=pltpu.CompilerParams(
            dimension_semantics=("parallel", "arbitrary"),
            vmem_limit_bytes=vmem_limit),
    )(memory_text, packed["wqkv"], packed["wo"], packed["w1"], packed["w2"],
      packed["svec"])


# ----------------------------------------------------------------------------
# Host-side parameter packing (stack layers, fuse QKV, pack small vectors).
# ----------------------------------------------------------------------------
def pack_layer_params(layer_params, weight_dtype=jnp.bfloat16):
    L = len(layer_params)
    D = int(np.asarray(layer_params[0]["wq_t"]).shape[0])
    F = int(np.asarray(layer_params[0]["w1_t"]).shape[1])
    Wmax = max(3 * D, F, D)

    wqkv = np.zeros((L, D, 3 * D), np.float32)
    wo = np.zeros((L, D, D), np.float32)
    w1 = np.zeros((L, D, F), np.float32)
    w2 = np.zeros((L, F, D), np.float32)
    svec = np.zeros((L, 8, Wmax), np.float32)

    for li, p in enumerate(layer_params):
        wqkv[li, :, 0:D] = np.asarray(p["wq_t"])
        wqkv[li, :, D:2 * D] = np.asarray(p["wk_t"])
        wqkv[li, :, 2 * D:3 * D] = np.asarray(p["wv_t"])
        wo[li] = np.asarray(p["wo_t"])
        w1[li] = np.asarray(p["w1_t"])
        w2[li] = np.asarray(p["w2_t"])
        svec[li, 0, 0:D] = np.asarray(p["bq"])[0]
        svec[li, 0, D:2 * D] = np.asarray(p["bk"])[0]
        svec[li, 0, 2 * D:3 * D] = np.asarray(p["bv"])[0]
        svec[li, 1, 0:F] = np.asarray(p["b1"])[0]
        svec[li, 2, 0:D] = np.asarray(p["bo"])[0]
        svec[li, 3, 0:D] = np.asarray(p["ln1_g"])[0]
        svec[li, 4, 0:D] = np.asarray(p["ln1_b"])[0]
        svec[li, 5, 0:D] = np.asarray(p["b2"])[0]
        svec[li, 6, 0:D] = np.asarray(p["ln2_g"])[0]
        svec[li, 7, 0:D] = np.asarray(p["ln2_b"])[0]

    return {
        "wqkv": jnp.asarray(wqkv, weight_dtype),
        "wo": jnp.asarray(wo, weight_dtype),
        "w1": jnp.asarray(w1, weight_dtype),
        "w2": jnp.asarray(w2, weight_dtype),
        "svec": jnp.asarray(svec, jnp.float32),   # biases / LN params kept f32
    }


# ----------------------------------------------------------------------------
# Pure-JAX f32 reference (mirrors PyTorch eval-mode math) for verification.
# ----------------------------------------------------------------------------
def reference_layer(x, p, nheads, eps=1e-5):
    B, S, D = x.shape
    Dh = D // nheads
    scale = 1.0 / np.sqrt(Dh)
    q = x @ p["wq_t"] + p["bq"]
    k = x @ p["wk_t"] + p["bk"]
    v = x @ p["wv_t"] + p["bv"]
    qh = q.reshape(B, S, nheads, Dh).transpose(0, 2, 1, 3)
    kh = k.reshape(B, S, nheads, Dh).transpose(0, 2, 1, 3)
    vh = v.reshape(B, S, nheads, Dh).transpose(0, 2, 1, 3)
    s = jnp.einsum("bhqd,bhkd->bhqk", qh * scale, kh)
    pattn = jax.nn.softmax(s, axis=-1)
    o = jnp.einsum("bhqk,bhkd->bhqd", pattn, vh).transpose(0, 2, 1, 3).reshape(B, S, D)
    o = o @ p["wo_t"] + p["bo"]
    y = x + o
    y = (y - y.mean(-1, keepdims=True)) / jnp.sqrt(y.var(-1, keepdims=True) + eps)
    y = y * p["ln1_g"] + p["ln1_b"]
    h = jnp.maximum(y @ p["w1_t"] + p["b1"], 0.0) @ p["w2_t"] + p["b2"]
    z = y + h
    z = (z - z.mean(-1, keepdims=True)) / jnp.sqrt(z.var(-1, keepdims=True) + eps)
    return z * p["ln2_g"] + p["ln2_b"]


def reference_forward(memory_text, layer_params, nheads):
    out = memory_text
    for p in layer_params:
        out = reference_layer(out, p, nheads)
    return out


def make_layer_params(key, d_model, dim_ff):
    ks = jax.random.split(key, 12)
    n = lambda k, shape, s=0.05: jax.random.normal(k, shape, jnp.float32) * s
    return {
        # Linear weights stored pre-transposed: y = x @ W_t + b
        "wq_t": n(ks[0], (d_model, d_model)), "bq": n(ks[1], (1, d_model)),
        "wk_t": n(ks[2], (d_model, d_model)), "bk": n(ks[3], (1, d_model)),
        "wv_t": n(ks[4], (d_model, d_model)), "bv": n(ks[5], (1, d_model)),
        "wo_t": n(ks[6], (d_model, d_model)), "bo": n(ks[7], (1, d_model)),
        "ln1_g": jnp.ones((1, d_model), jnp.float32),
        "ln1_b": jnp.zeros((1, d_model), jnp.float32),
        "w1_t": n(ks[8], (d_model, dim_ff)), "b1": n(ks[9], (1, dim_ff)),
        "w2_t": n(ks[10], (dim_ff, d_model)), "b2": n(ks[11], (1, d_model)),
        "ln2_g": jnp.ones((1, d_model), jnp.float32),
        "ln2_b": jnp.zeros((1, d_model), jnp.float32),
    }


if __name__ == "__main__":
    # Small, forward-consistent shapes.
    bs, num_token, d_model, nheads, dim_ff, num_layers = 2, 8, 32, 4, 64, 2

    root = jax.random.PRNGKey(0)
    k_x, k_p = jax.random.split(root)
    memory_text = jax.random.normal(k_x, (bs, num_token, d_model), jnp.float32)
    text_attention_mask = jnp.zeros((bs, num_token), jnp.bool_)   # unused on this call path

    layer_keys = jax.random.split(k_p, num_layers)
    layer_params = [make_layer_params(k, d_model, dim_ff) for k in layer_keys]
    packed = pack_layer_params(layer_params, weight_dtype=jnp.bfloat16)

    out = text_transformer_forward(memory_text, text_attention_mask, packed, nheads,
                                   batch_chunks=1)
    out = jax.block_until_ready(out)

    ref = reference_forward(memory_text, layer_params, nheads)
    # Tolerance accounts for bf16 MXU operands (weights + activations) vs the f32 reference.
    np.testing.assert_allclose(np.asarray(out), np.asarray(ref), rtol=2e-2, atol=2e-2)
    assert out.shape == (bs, num_token, d_model)

    print("KERNEL_OK")
</pallas_src>

<mosaic_0001>
module attributes {stable_mosaic.version = 11 : i64} {
  func.func @text_encoder_kernel(%arg0: i32, %arg1: i32, %arg2: memref<2x8x32xf32, #tpu.memory_space<vmem>>, %arg3: memref<1x32x96xbf16, #tpu.memory_space<vmem>>, %arg4: memref<1x32x32xbf16, #tpu.memory_space<vmem>>, %arg5: memref<1x32x64xbf16, #tpu.memory_space<vmem>>, %arg6: memref<1x64x32xbf16, #tpu.memory_space<vmem>>, %arg7: memref<1x8x96xf32, #tpu.memory_space<vmem>>, %arg8: memref<2x8x32xf32, #tpu.memory_space<vmem>>, %arg9: memref<16x32xf32, #tpu.memory_space<vmem>>) attributes {dimension_semantics = [#tpu.dimension_semantics<parallel>, #tpu.dimension_semantics<arbitrary>], iteration_bounds = array<i64: 1, 2>, scalar_prefetch = 0 : i64, scratch_operands = 1 : i64, tpu.core_type = #tpu.core_type<tc>, window_params = [{transform_indices = @transform_0, window_bounds = array<i64: 2, 8, 32>}, {transform_indices = @transform_1, window_bounds = array<i64: 1, 32, 96>}, {transform_indices = @transform_2, window_bounds = array<i64: 1, 32, 32>}, {transform_indices = @transform_3, window_bounds = array<i64: 1, 32, 64>}, {transform_indices = @transform_4, window_bounds = array<i64: 1, 64, 32>}, {transform_indices = @transform_5, window_bounds = array<i64: 1, 8, 96>}, {transform_indices = @transform_6, window_bounds = array<i64: 2, 8, 32>}]} {
    %c0_i32 = arith.constant 0 : i32
    %0 = arith.cmpi eq, %arg1, %c0_i32 : i32
    %1 = arith.extui %0 : i1 to i32
    %c0_i32_0 = arith.constant 0 : i32
    %2 = arith.cmpi ne, %1, %c0_i32_0 : i32
    scf.if %2 {
      %c0_54 = arith.constant 0 : index
      %c0_55 = arith.constant 0 : index
      %c0_56 = arith.constant 0 : index
      %157 = vector.load %arg2[%c0_54, %c0_55, %c0_56] : memref<2x8x32xf32, #tpu.memory_space<vmem>>, vector<2x8x32xf32>
      %158 = vector.shape_cast %157 : vector<2x8x32xf32> to vector<16x32xf32>
      %c0_57 = arith.constant 0 : index
      %c0_58 = arith.constant 0 : index
      %159 = vector.load %arg9[%c0_57, %c0_58] : memref<16x32xf32, #tpu.memory_space<vmem>>, vector<16x32xf32>
      tpu.vector_store %arg9[%c0_57, %c0_58], %158 {strides = array<i32>} : memref<16x32xf32, #tpu.memory_space<vmem>>, vector<16x32xf32>,
    } else {
    }
    %c0 = arith.constant 0 : index
    %c0_1 = arith.constant 0 : index
    %3 = vector.load %arg9[%c0, %c0_1] : memref<16x32xf32, #tpu.memory_space<vmem>>, vector<16x32xf32>
    %c0_2 = arith.constant 0 : index
    %c0_3 = arith.constant 0 : index
    %c0_4 = arith.constant 0 : index
    %4 = vector.load %arg7[%c0_2, %c0_3, %c0_4] : memref<1x8x96xf32, #tpu.memory_space<vmem>>, vector<1x8x96xf32>
    %5 = vector.shape_cast %4 : vector<1x8x96xf32> to vector<8x96xf32>
    %6 = vector.extract_strided_slice %5 {offsets = [0, 0], sizes = [1, 96], strides = [1, 1]} : vector<8x96xf32> to vector<1x96xf32>
    %7 = vector.extract_strided_slice %5 {offsets = [1, 0], sizes = [1, 64], strides = [1, 1]} : vector<8x96xf32> to vector<1x64xf32>
    %8 = vector.extract_strided_slice %5 {offsets = [2, 0], sizes = [1, 32], strides = [1, 1]} : vector<8x96xf32> to vector<1x32xf32>
    %9 = vector.extract_strided_slice %5 {offsets = [3, 0], sizes = [1, 32], strides = [1, 1]} : vector<8x96xf32> to vector<1x32xf32>
    %10 = vector.extract_strided_slice %5 {offsets = [4, 0], sizes = [1, 32], strides = [1, 1]} : vector<8x96xf32> to vector<1x32xf32>
    %11 = vector.extract_strided_slice %5 {offsets = [5, 0], sizes = [1, 32], strides = [1, 1]} : vector<8x96xf32> to vector<1x32xf32>
    %12 = vector.extract_strided_slice %5 {offsets = [6, 0], sizes = [1, 32], strides = [1, 1]} : vector<8x96xf32> to vector<1x32xf32>
    %13 = vector.extract_strided_slice %5 {offsets = [7, 0], sizes = [1, 32], strides = [1, 1]} : vector<8x96xf32> to vector<1x32xf32>
    %14 = arith.truncf %3 : vector<16x32xf32> to vector<16x32xbf16>
    %c0_5 = arith.constant 0 : index
    %c0_6 = arith.constant 0 : index
    %c0_7 = arith.constant 0 : index
    %15 = vector.load %arg3[%c0_5, %c0_6, %c0_7] : memref<1x32x96xbf16, #tpu.memory_space<vmem>>, vector<1x32x96xbf16>
    %16 = vector.shape_cast %15 : vector<1x32x96xbf16> to vector<32x96xbf16>
    %cst = arith.constant dense<0.000000e+00> : vector<16x96xf32>
    %17 = tpu.matmul %14, %16, %cst {dimension_numbers = #tpu.dot_dimension_numbers<[1], [0], [0], [1], [0, 0, 1, 1], [], []>} : vector<16x32xbf16>, vector<32x96xbf16>, vector<16x96xf32> -> vector<16x96xf32>
    %18 = vector.broadcast %6 : vector<1x96xf32> to vector<16x96xf32>
    %19 = arith.addf %17, %18 : vector<16x96xf32>
    %20 = vector.shape_cast %19 : vector<16x96xf32> to vector<2x8x96xf32>
    %21 = vector.extract_strided_slice %20 {offsets = [0, 0, 0], sizes = [2, 8, 8], strides = [1, 1, 1]} : vector<2x8x96xf32> to vector<2x8x8xf32>
    %cst_8 = arith.constant 0.353553385 : f32
    %22 = vector.broadcast %cst_8 : f32 to vector<2x8x8xf32>
    %23 = arith.mulf %21, %22 : vector<2x8x8xf32>
    %24 = vector.extract_strided_slice %20 {offsets = [0, 0, 32], sizes = [2, 8, 8], strides = [1, 1, 1]} : vector<2x8x96xf32> to vector<2x8x8xf32>
    %25 = vector.extract_strided_slice %20 {offsets = [0, 0, 64], sizes = [2, 8, 8], strides = [1, 1, 1]} : vector<2x8x96xf32> to vector<2x8x8xf32>
    "tpu.trace_start"() <{level = 10 : i32, message = "bqd,bkd->bqk"}> : () -> ()
    %cst_9 = arith.constant dense<0.000000e+00> : vector<2x8x8xf32>
    %26 = tpu.matmul %23, %24, %cst_9 {dimension_numbers = #tpu.dot_dimension_numbers<[2], [2], [1], [1], [0, 0, 0, 1, 1, 1], [0], [0]>} : vector<2x8x8xf32>, vector<2x8x8xf32>, vector<2x8x8xf32> -> vector<2x8x8xf32>
    "tpu.trace_stop"() : () -> ()
    %cst_10 = arith.constant dense<0xFF800000> : vector<2x8xf32>
    %27 = vector.multi_reduction <maximumf>, %26, %cst_10 [2] : vector<2x8x8xf32> to vector<2x8xf32>
    %28 = vector.shape_cast %27 : vector<2x8xf32> to vector<2x8x1xf32>
    %29 = vector.broadcast %28 : vector<2x8x1xf32> to vector<2x8x8xf32>
    %30 = arith.subf %26, %29 : vector<2x8x8xf32>
    %31 = math.exp %30 : vector<2x8x8xf32>
    %cst_11 = arith.constant dense<0.000000e+00> : vector<2x8xf32>
    %32 = vector.multi_reduction <add>, %31, %cst_11 [2] : vector<2x8x8xf32> to vector<2x8xf32>
    %33 = vector.shape_cast %32 : vector<2x8xf32> to vector<2x8x1xf32>
    %34 = vector.broadcast %33 : vector<2x8x1xf32> to vector<2x8x8xf32>
    %35 = arith.divf %31, %34 : vector<2x8x8xf32>
    "tpu.trace_start"() <{level = 10 : i32, message = "bqk,bkd->bqd"}> : () -> ()
    %cst_12 = arith.constant dense<0.000000e+00> : vector<2x8x8xf32>
    %36 = tpu.matmul %35, %25, %cst_12 {dimension_numbers = #tpu.dot_dimension_numbers<[2], [1], [1], [2], [0, 0, 0, 1, 1, 2], [0], [0]>} : vector<2x8x8xf32>, vector<2x8x8xf32>, vector<2x8x8xf32> -> vector<2x8x8xf32>
    "tpu.trace_stop"() : () -> ()
    %37 = vector.extract_strided_slice %20 {offsets = [0, 0, 8], sizes = [2, 8, 8], strides = [1, 1, 1]} : vector<2x8x96xf32> to vector<2x8x8xf32>
    %cst_13 = arith.constant 0.353553385 : f32
    %38 = vector.broadcast %cst_13 : f32 to vector<2x8x8xf32>
    %39 = arith.mulf %37, %38 : vector<2x8x8xf32>
    %40 = vector.extract_strided_slice %20 {offsets = [0, 0, 40], sizes = [2, 8, 8], strides = [1, 1, 1]} : vector<2x8x96xf32> to vector<2x8x8xf32>
    %41 = vector.extract_strided_slice %20 {offsets = [0, 0, 72], sizes = [2, 8, 8], strides = [1, 1, 1]} : vector<2x8x96xf32> to vector<2x8x8xf32>
    "tpu.trace_start"() <{level = 10 : i32, message = "bqd,bkd->bqk"}> : () -> ()
    %cst_14 = arith.constant dense<0.000000e+00> : vector<2x8x8xf32>
    %42 = tpu.matmul %39, %40, %cst_14 {dimension_numbers = #tpu.dot_dimension_numbers<[2], [2], [1], [1], [0, 0, 0, 1, 1, 1], [0], [0]>} : vector<2x8x8xf32>, vector<2x8x8xf32>, vector<2x8x8xf32> -> vector<2x8x8xf32>
    "tpu.trace_stop"() : () -> ()
    %cst_15 = arith.constant dense<0xFF800000> : vector<2x8xf32>
    %43 = vector.multi_reduction <maximumf>, %42, %cst_15 [2] : vector<2x8x8xf32> to vector<2x8xf32>
    %44 = vector.shape_cast %43 : vector<2x8xf32> to vector<2x8x1xf32>
    %45 = vector.broadcast %44 : vector<2x8x1xf32> to vector<2x8x8xf32>
    %46 = arith.subf %42, %45 : vector<2x8x8xf32>
    %47 = math.exp %46 : vector<2x8x8xf32>
    %cst_16 = arith.constant dense<0.000000e+00> : vector<2x8xf32>
    %48 = vector.multi_reduction <add>, %47, %cst_16 [2] : vector<2x8x8xf32> to vector<2x8xf32>
    %49 = vector.shape_cast %48 : vector<2x8xf32> to vector<2x8x1xf32>
    %50 = vector.broadcast %49 : vector<2x8x1xf32> to vector<2x8x8xf32>
    %51 = arith.divf %47, %50 : vector<2x8x8xf32>
    "tpu.trace_start"() <{level = 10 : i32, message = "bqk,bkd->bqd"}> : () -> ()
    %cst_17 = arith.constant dense<0.000000e+00> : vector<2x8x8xf32>
    %52 = tpu.matmul %51, %41, %cst_17 {dimension_numbers = #tpu.dot_dimension_numbers<[2], [1], [1], [2], [0, 0, 0, 1, 1, 2], [0], [0]>} : vector<2x8x8xf32>, vector<2x8x8xf32>, vector<2x8x8xf32> -> vector<2x8x8xf32>
    "tpu.trace_stop"() : () -> ()
    %53 = vector.extract_strided_slice %20 {offsets = [0, 0, 16], sizes = [2, 8, 8], strides = [1, 1, 1]} : vector<2x8x96xf32> to vector<2x8x8xf32>
    %cst_18 = arith.constant 0.353553385 : f32
    %54 = vector.broadcast %cst_18 : f32 to vector<2x8x8xf32>
    %55 = arith.mulf %53, %54 : vector<2x8x8xf32>
    %56 = vector.extract_strided_slice %20 {offsets = [0, 0, 48], sizes = [2, 8, 8], strides = [1, 1, 1]} : vector<2x8x96xf32> to vector<2x8x8xf32>
    %57 = vector.extract_strided_slice %20 {offsets = [0, 0, 80], sizes = [2, 8, 8], strides = [1, 1, 1]} : vector<2x8x96xf32> to vector<2x8x8xf32>
    "tpu.trace_start"() <{level = 10 : i32, message = "bqd,bkd->bqk"}> : () -> ()
    %cst_19 = arith.constant dense<0.000000e+00> : vector<2x8x8xf32>
    %58 = tpu.matmul %55, %56, %cst_19 {dimension_numbers = #tpu.dot_dimension_numbers<[2], [2], [1], [1], [0, 0, 0, 1, 1, 1], [0], [0]>} : vector<2x8x8xf32>, vector<2x8x8xf32>, vector<2x8x8xf32> -> vector<2x8x8xf32>
    "tpu.trace_stop"() : () -> ()
    %cst_20 = arith.constant dense<0xFF800000> : vector<2x8xf32>
    %59 = vector.multi_reduction <maximumf>, %58, %cst_20 [2] : vector<2x8x8xf32> to vector<2x8xf32>
    %60 = vector.shape_cast %59 : vector<2x8xf32> to vector<2x8x1xf32>
    %61 = vector.broadcast %60 : vector<2x8x1xf32> to vector<2x8x8xf32>
    %62 = arith.subf %58, %61 : vector<2x8x8xf32>
    %63 = math.exp %62 : vector<2x8x8xf32>
    %cst_21 = arith.constant dense<0.000000e+00> : vector<2x8xf32>
    %64 = vector.multi_reduction <add>, %63, %cst_21 [2] : vector<2x8x8xf32> to vector<2x8xf32>
    %65 = vector.shape_cast %64 : vector<2x8xf32> to vector<2x8x1xf32>
    %66 = vector.broadcast %65 : vector<2x8x1xf32> to vector<2x8x8xf32>
    %67 = arith.divf %63, %66 : vector<2x8x8xf32>
    "tpu.trace_start"() <{level = 10 : i32, message = "bqk,bkd->bqd"}> : () -> ()
    %cst_22 = arith.constant dense<0.000000e+00> : vector<2x8x8xf32>
    %68 = tpu.matmul %67, %57, %cst_22 {dimension_numbers = #tpu.dot_dimension_numbers<[2], [1], [1], [2], [0, 0, 0, 1, 1, 2], [0], [0]>} : vector<2x8x8xf32>, vector<2x8x8xf32>, vector<2x8x8xf32> -> vector<2x8x8xf32>
    "tpu.trace_stop"() : () -> ()
    %69 = vector.extract_strided_slice %20 {offsets = [0, 0, 24], sizes = [2, 8, 8], strides = [1, 1, 1]} : vector<2x8x96xf32> to vector<2x8x8xf32>
    %cst_23 = arith.constant 0.353553385 : f32
    %70 = vector.broadcast %cst_23 : f32 to vector<2x8x8xf32>
    %71 = arith.mulf %69, %70 : vector<2x8x8xf32>
    %72 = vector.extract_strided_slice %20 {offsets = [0, 0, 56], sizes = [2, 8, 8], strides = [1, 1, 1]} : vector<2x8x96xf32> to vector<2x8x8xf32>
    %73 = vector.extract_strided_slice %20 {offsets = [0, 0, 88], sizes = [2, 8, 8], strides = [1, 1, 1]} : vector<2x8x96xf32> to vector<2x8x8xf32>
    "tpu.trace_start"() <{level = 10 : i32, message = "bqd,bkd->bqk"}> : () -> ()
    %cst_24 = arith.constant dense<0.000000e+00> : vector<2x8x8xf32>
    %74 = tpu.matmul %71, %72, %cst_24 {dimension_numbers = #tpu.dot_dimension_numbers<[2], [2], [1], [1], [0, 0, 0, 1, 1, 1], [0], [0]>} : vector<2x8x8xf32>, vector<2x8x8xf32>, vector<2x8x8xf32> -> vector<2x8x8xf32>
    "tpu.trace_stop"() : () -> ()
    %cst_25 = arith.constant dense<0xFF800000> : vector<2x8xf32>
    %75 = vector.multi_reduction <maximumf>, %74, %cst_25 [2] : vector<2x8x8xf32> to vector<2x8xf32>
    %76 = vector.shape_cast %75 : vector<2x8xf32> to vector<2x8x1xf32>
    %77 = vector.broadcast %76 : vector<2x8x1xf32> to vector<2x8x8xf32>
    %78 = arith.subf %74, %77 : vector<2x8x8xf32>
    %79 = math.exp %78 : vector<2x8x8xf32>
    %cst_26 = arith.constant dense<0.000000e+00> : vector<2x8xf32>
    %80 = vector.multi_reduction <add>, %79, %cst_26 [2] : vector<2x8x8xf32> to vector<2x8xf32>
    %81 = vector.shape_cast %80 : vector<2x8xf32> to vector<2x8x1xf32>
    %82 = vector.broadcast %81 : vector<2x8x1xf32> to vector<2x8x8xf32>
    %83 = arith.divf %79, %82 : vector<2x8x8xf32>
    "tpu.trace_start"() <{level = 10 : i32, message = "bqk,bkd->bqd"}> : () -> ()
    %cst_27 = arith.constant dense<0.000000e+00> : vector<2x8x8xf32>
    %84 = tpu.matmul %83, %73, %cst_27 {dimension_numbers = #tpu.dot_dimension_numbers<[2], [1], [1], [2], [0, 0, 0, 1, 1, 2], [0], [0]>} : vector<2x8x8xf32>, vector<2x8x8xf32>, vector<2x8x8xf32> -> vector<2x8x8xf32>
    "tpu.trace_stop"() : () -> ()
    %85 = tpu.concatenate %36, %52, %68, %84 in 2 : vector<2x8x8xf32>, vector<2x8x8xf32>, vector<2x8x8xf32>, vector<2x8x8xf32> -> vector<2x8x32xf32>
    %86 = vector.shape_cast %85 : vector<2x8x32xf32> to vector<16x32xf32>
    %87 = arith.truncf %86 : vector<16x32xf32> to vector<16x32xbf16>
    %c0_28 = arith.constant 0 : index
    %c0_29 = arith.constant 0 : index
    %c0_30 = arith.constant 0 : index
    %88 = vector.load %arg4[%c0_28, %c0_29, %c0_30] : memref<1x32x32xbf16, #tpu.memory_space<vmem>>, vector<1x32x32xbf16>
    %89 = vector.shape_cast %88 : vector<1x32x32xbf16> to vector<32x32xbf16>
    %cst_31 = arith.constant dense<0.000000e+00> : vector<16x32xf32>
    %90 = tpu.matmul %87, %89, %cst_31 {dimension_numbers = #tpu.dot_dimension_numbers<[1], [0], [0], [1], [0, 0, 1, 1], [], []>} : vector<16x32xbf16>, vector<32x32xbf16>, vector<16x32xf32> -> vector<16x32xf32>
    %91 = vector.broadcast %8 : vector<1x32xf32> to vector<16x32xf32>
    %92 = arith.addf %90, %91 : vector<16x32xf32>
    %93 = arith.addf %3, %92 : vector<16x32xf32>
    %cst_32 = arith.constant dense<0.000000e+00> : vector<16xf32>
    %94 = vector.multi_reduction <add>, %93, %cst_32 [1] : vector<16x32xf32> to vector<16xf32>
    %95 = vector.shape_cast %94 : vector<16xf32> to vector<16x1xf32>
    %cst_33 = arith.constant 3.200000e+01 : f32
    %96 = vector.broadcast %cst_33 : f32 to vector<16x1xf32>
    %97 = arith.divf %95, %96 : vector<16x1xf32>
    %98 = vector.broadcast %97 : vector<16x1xf32> to vector<16x32xf32>
    %99 = arith.subf %93, %98 : vector<16x32xf32>
    %100 = arith.mulf %99, %99 : vector<16x32xf32>
    %cst_34 = arith.constant dense<0.000000e+00> : vector<16xf32>
    %101 = vector.multi_reduction <add>, %100, %cst_34 [1] : vector<16x32xf32> to vector<16xf32>
    %102 = vector.shape_cast %101 : vector<16xf32> to vector<16x1xf32>
    %cst_35 = arith.constant 3.200000e+01 : f32
    %103 = vector.broadcast %cst_35 : f32 to vector<16x1xf32>
    %104 = arith.divf %102, %103 : vector<16x1xf32>
    %105 = vector.broadcast %97 : vector<16x1xf32> to vector<16x32xf32>
    %106 = arith.subf %93, %105 : vector<16x32xf32>
    %cst_36 = arith.constant 9.99999974E-6 : f32
    %107 = vector.broadcast %cst_36 : f32 to vector<16x1xf32>
    %108 = arith.addf %104, %107 : vector<16x1xf32>
    %109 = math.rsqrt %108 : vector<16x1xf32>
    %110 = vector.broadcast %109 : vector<16x1xf32> to vector<16x32xf32>
    %111 = arith.mulf %106, %110 : vector<16x32xf32>
    %112 = vector.broadcast %9 : vector<1x32xf32> to vector<16x32xf32>
    %113 = arith.mulf %111, %112 : vector<16x32xf32>
    %114 = vector.broadcast %10 : vector<1x32xf32> to vector<16x32xf32>
    %115 = arith.addf %113, %114 : vector<16x32xf32>
    %116 = arith.truncf %115 : vector<16x32xf32> to vector<16x32xbf16>
    %c0_37 = arith.constant 0 : index
    %c0_38 = arith.constant 0 : index
    %c0_39 = arith.constant 0 : index
    %117 = vector.load %arg5[%c0_37, %c0_38, %c0_39] : memref<1x32x64xbf16, #tpu.memory_space<vmem>>, vector<1x32x64xbf16>
    %118 = vector.shape_cast %117 : vector<1x32x64xbf16> to vector<32x64xbf16>
    %cst_40 = arith.constant dense<0.000000e+00> : vector<16x64xf32>
    %119 = tpu.matmul %116, %118, %cst_40 {dimension_numbers = #tpu.dot_dimension_numbers<[1], [0], [0], [1], [0, 0, 1, 1], [], []>} : vector<16x32xbf16>, vector<32x64xbf16>, vector<16x64xf32> -> vector<16x64xf32>
    %120 = vector.broadcast %7 : vector<1x64xf32> to vector<16x64xf32>
    %121 = arith.addf %119, %120 : vector<16x64xf32>
    %cst_41 = arith.constant 0.000000e+00 : f32
    %122 = vector.broadcast %cst_41 : f32 to vector<16x64xf32>
    %123 = arith.maximumf %121, %122 : vector<16x64xf32>
    %124 = arith.truncf %123 : vector<16x64xf32> to vector<16x64xbf16>
    %c0_42 = arith.constant 0 : index
    %c0_43 = arith.constant 0 : index
    %c0_44 = arith.constant 0 : index
    %125 = vector.load %arg6[%c0_42, %c0_43, %c0_44] : memref<1x64x32xbf16, #tpu.memory_space<vmem>>, vector<1x64x32xbf16>
    %126 = vector.shape_cast %125 : vector<1x64x32xbf16> to vector<64x32xbf16>
    %cst_45 = arith.constant dense<0.000000e+00> : vector<16x32xf32>
    %127 = tpu.matmul %124, %126, %cst_45 {dimension_numbers = #tpu.dot_dimension_numbers<[1], [0], [0], [1], [0, 0, 1, 1], [], []>} : vector<16x64xbf16>, vector<64x32xbf16>, vector<16x32xf32> -> vector<16x32xf32>
    %128 = vector.broadcast %11 : vector<1x32xf32> to vector<16x32xf32>
    %129 = arith.addf %127, %128 : vector<16x32xf32>
    %130 = arith.addf %115, %129 : vector<16x32xf32>
    %cst_46 = arith.constant dense<0.000000e+00> : vector<16xf32>
    %131 = vector.multi_reduction <add>, %130, %cst_46 [1] : vector<16x32xf32> to vector<16xf32>
    %132 = vector.shape_cast %131 : vector<16xf32> to vector<16x1xf32>
    %cst_47 = arith.constant 3.200000e+01 : f32
    %133 = vector.broadcast %cst_47 : f32 to vector<16x1xf32>
    %134 = arith.divf %132, %133 : vector<16x1xf32>
    %135 = vector.broadcast %134 : vector<16x1xf32> to vector<16x32xf32>
    %136 = arith.subf %130, %135 : vector<16x32xf32>
    %137 = arith.mulf %136, %136 : vector<16x32xf32>
    %cst_48 = arith.constant dense<0.000000e+00> : vector<16xf32>
    %138 = vector.multi_reduction <add>, %137, %cst_48 [1] : vector<16x32xf32> to vector<16xf32>
    %139 = vector.shape_cast %138 : vector<16xf32> to vector<16x1xf32>
    %cst_49 = arith.constant 3.200000e+01 : f32
    %140 = vector.broadcast %cst_49 : f32 to vector<16x1xf32>
    %141 = arith.divf %139, %140 : vector<16x1xf32>
    %142 = vector.broadcast %134 : vector<16x1xf32> to vector<16x32xf32>
    %143 = arith.subf %130, %142 : vector<16x32xf32>
    %cst_50 = arith.constant 9.99999974E-6 : f32
    %144 = vector.broadcast %cst_50 : f32 to vector<16x1xf32>
    %145 = arith.addf %141, %144 : vector<16x1xf32>
    %146 = math.rsqrt %145 : vector<16x1xf32>
    %147 = vector.broadcast %146 : vector<16x1xf32> to vector<16x32xf32>
    %148 = arith.mulf %143, %147 : vector<16x32xf32>
    %149 = vector.broadcast %12 : vector<1x32xf32> to vector<16x32xf32>
    %150 = arith.mulf %148, %149 : vector<16x32xf32>
    %151 = vector.broadcast %13 : vector<1x32xf32> to vector<16x32xf32>
    %152 = arith.addf %150, %151 : vector<16x32xf32>
    %c0_51 = arith.constant 0 : index
    %c0_52 = arith.constant 0 : index
    %153 = vector.load %arg9[%c0_51, %c0_52] : memref<16x32xf32, #tpu.memory_space<vmem>>, vector<16x32xf32>
    tpu.vector_store %arg9[%c0_51, %c0_52], %152 {strides = array<i32>} : memref<16x32xf32, #tpu.memory_space<vmem>>, vector<16x32xf32>,
    %c1_i32 = arith.constant 1 : i32
    %154 = arith.cmpi eq, %arg1, %c1_i32 : i32
    %155 = arith.extui %154 : i1 to i32
    %c0_i32_53 = arith.constant 0 : i32
    %156 = arith.cmpi ne, %155, %c0_i32_53 : i32
    scf.if %156 {
      %157 = vector.shape_cast %152 : vector<16x32xf32> to vector<2x8x32xf32>
      %c0_54 = arith.constant 0 : index
      %c0_55 = arith.constant 0 : index
      %c0_56 = arith.constant 0 : index
      %158 = vector.load %arg8[%c0_54, %c0_55, %c0_56] : memref<2x8x32xf32, #tpu.memory_space<vmem>>, vector<2x8x32xf32>
      tpu.vector_store %arg8[%c0_54, %c0_55, %c0_56], %157 {strides = array<i32>} : memref<2x8x32xf32, #tpu.memory_space<vmem>>, vector<2x8x32xf32>,
    } else {
    }
    return
  }
  func.func @transform_0(%arg0: i32, %arg1: i32) -> (i32, i32, i32) {
    %c0_i32 = arith.constant 0 : i32
    %c0_i32_0 = arith.constant 0 : i32
    %c0_i32_1 = arith.constant 0 : i32
    return %arg0, %c0_i32, %c0_i32_0 : i32, i32, i32
  }
  func.func @transform_1(%arg0: i32, %arg1: i32) -> (i32, i32, i32) {
    %c0_i32 = arith.constant 0 : i32
    %c0_i32_0 = arith.constant 0 : i32
    %c0_i32_1 = arith.constant 0 : i32
    return %arg1, %c0_i32, %c0_i32_0 : i32, i32, i32
  }
  func.func @transform_2(%arg0: i32, %arg1: i32) -> (i32, i32, i32) {
    %c0_i32 = arith.constant 0 : i32
    %c0_i32_0 = arith.constant 0 : i32
    %c0_i32_1 = arith.constant 0 : i32
    return %arg1, %c0_i32, %c0_i32_0 : i32, i32, i32
  }
  func.func @transform_3(%arg0: i32, %arg1: i32) -> (i32, i32, i32) {
    %c0_i32 = arith.constant 0 : i32
    %c0_i32_0 = arith.constant 0 : i32
    %c0_i32_1 = arith.constant 0 : i32
    return %arg1, %c0_i32, %c0_i32_0 : i32, i32, i32
  }
  func.func @transform_4(%arg0: i32, %arg1: i32) -> (i32, i32, i32) {
    %c0_i32 = arith.constant 0 : i32
    %c0_i32_0 = arith.constant 0 : i32
    %c0_i32_1 = arith.constant 0 : i32
    return %arg1, %c0_i32, %c0_i32_0 : i32, i32, i32
  }
  func.func @transform_5(%arg0: i32, %arg1: i32) -> (i32, i32, i32) {
    %c0_i32 = arith.constant 0 : i32
    %c0_i32_0 = arith.constant 0 : i32
    %c0_i32_1 = arith.constant 0 : i32
    return %arg1, %c0_i32, %c0_i32_0 : i32, i32, i32
  }
  func.func @transform_6(%arg0: i32, %arg1: i32) -> (i32, i32, i32) {
    %c0_i32 = arith.constant 0 : i32
    %c0_i32_0 = arith.constant 0 : i32
    %c0_i32_1 = arith.constant 0 : i32
    return %arg0, %c0_i32, %c0_i32_0 : i32, i32, i32
  }
}

</mosaic_0001>

<llo_original>
// kernel: tpu_custom_call.1
$region0: #{tpu_custom_call.1}
  #allocation0 [shape = 'u32[]', space=smem, size = 0x4, offset = 0x4, fixed_abs, tag = 'smem constant byte address 0x4 - core index']
  #allocation1 [shape = 'u32[144,128]{1,0:T(1,128)}', space=vmem, size = 0x12000, scoped, tag = 'internal scratch']
  #allocation2 [shape = 'f32[16,32]{1,0:T(8,128)}', space=vmem, size = 0x2000, scoped, tag = 'scratch operand']
  %s0 = inlined_call_operand.hbm [shape: f32[2,8,32], index: 0, kind: input, shape index: {}]
  %s1 = inlined_call_operand.vmem [shape: bf16[2,32,96], index: 1, kind: input, shape index: {}]
  %s2 = inlined_call_operand.vmem [shape: bf16[2,32,32], index: 2, kind: input, shape index: {}]
  %s3 = inlined_call_operand.vmem [shape: bf16[2,32,64], index: 3, kind: input, shape index: {}]
  %s4 = inlined_call_operand.vmem [shape: bf16[2,64,32], index: 4, kind: input, shape index: {}]
  %s5 = inlined_call_operand.hbm [shape: f32[2,8,96], index: 5, kind: input, shape index: {}]
  %s6 = inlined_call_operand.hbm [shape: f32[2,8,32], index: 6, kind: output, shape index: {}]
  %s7 = sld [smem:[#allocation0]]
  $region73: #{tpu_custom_call.1} parent=0
    _
  %s9 = ssub.s32 1, %s7
  %s10 = scalar_select 0, %s9, %s7
  $region1: #{tpu_custom_call.1} parent=0
    #allocation3 [shape = 'u8[8192]{0}', space=vmem, size = 0x2000, scoped, tag = 'input window, operand 0, single buffered']
    #allocation4 [shape = 's32[2]{0}', space=sflag, size = 0x8, scoped, tag = 'scoped memory for tpu_custom_call.1']
    #allocation5 [shape = 's32[2]{0}', space=sflag, size = 0x8, scoped, tag = 'scoped memory for tpu_custom_call.1']
    #allocation6 [shape = 'u8[8192]{0}', space=vmem, size = 0x2000, scoped, tag = 'input window, operand 5']
    #allocation7 [shape = 's32[2]{0}', space=sflag, size = 0x8, scoped, tag = 'scoped memory for tpu_custom_call.1']
    #allocation8 [shape = 'u8[8192]{0}', space=vmem, size = 0x2000, scoped, tag = 'output window, operand 0, single buffered']
    %11 = vsyncpa [#allocation4], 0
    %12 = vsyncpa [#allocation7], 0
    %s13 = scalar_lea.sflag [#allocation7], 1
    %14 = vsyncpa %s13, 0
    %15 = vsyncpa [#allocation5], 0
    loop: start=0, step=1, limit=4
    $region2: #{tpu_custom_call.1} parent=1 // loop_pre_header
      _
    $region3: #{tpu_custom_call.1} parent=1 // loop_header
      %s17 = sphi 0, %s21
      %p18 = scmp.ge.s32.totalorder %s17, 4
      %s24 = sphi 0, %s36
      %s25 = sphi 0, %s32
      %s26 = sphi 0, %s24
      %s27 = sphi 0, %s25
      %s28 = sphi 0, %s26
      %s29 = sphi 0, %s27
      %s39 = sphi 0, %s41
      %s42 = sphi 0, %s39
      %s43 = sphi 0, %s42
      %s59 = sphi 0, %s43
      %s65 = sphi 0, %s67
      %s68 = sphi 0, %s65
      %s69 = sphi 0, %s68
      %s85 = sphi 0, %s69
      %s91 = sphi 0, %s93
      %s94 = sphi 0, %s91
      %s95 = sphi 0, %s94
      %s111 = sphi 0, %s95
      %s117 = sphi 0, %s119
      %s120 = sphi 0, %s117
      %s121 = sphi 0, %s120
      %s137 = sphi 0, %s121
      %s143 = sphi 0, %s145
      %s146 = sphi 0, %s143
      %s147 = sphi 0, %s146
      %s163 = sphi 0, %s147
      %s169 = sphi 0, %s171
      %s172 = sphi 0, %s169
      %s173 = sphi 0, %s172
      %s189 = sphi 0, %s173
      %s195 = sphi 0, %s197
      %s198 = sphi 0, %s195
      %s199 = sphi 0, %s198
      %s215 = sphi 0, %s199
    $region4: #{tpu_custom_call.1} parent=1 // loop_header_branch
      %20 = sbr.rel (%p18) target = $region8
    $region5: #{tpu_custom_call.1} parent=1 // loop_body
      %s22 = ssub.s32 %s17, 1
      %s23 = ssub.s32 %s17, 2
      %s30 = sadd.s32 1, %s25
      %p31 = scmp.ge.s32.totalorder %s30, 2
      %s32 = scalar_select %p31, 0, %s30
      %s33 = sadd.s32 1, %s24
      %s34 = scalar_select %p31, %s33, %s24
      %p35 = scmp.ge.s32.totalorder %s34, 1
      %s36 = scalar_select %p35, 0, %s34
      %s37 = ssub.s32 %s24, %s36
      %p38 = scmp.eq.s32.totalorder %s37, 0
      %s40 = sadd.s32 %s39, 1
      %s41 = scalar_select %p38, %s39, %s40
      %p44 = pneg %p38
      %p45 = scmp.eq.s32.totalorder %s17, 1
      %p46 = por %p44, %p45
      %p47 = scmp.ne.s32.totalorder %s39, %s42
      %p48 = scmp.eq.s32.totalorder %s17, 0
      %p49 = por %p47, %p48
      %p50 = scmp.ne.s32.totalorder %s39, %s42
      %p51 = scmp.eq.s32.totalorder %s22, 1
      %p52 = por %p50, %p51
      %p53 = scmp.ne.s32.totalorder %s42, %s43
      %p54 = scmp.eq.s32.totalorder %s22, 0
      %p55 = por %p53, %p54
      %p56 = scmp.ne.s32.totalorder %s42, %s43
      %p57 = scmp.eq.s32.totalorder %s23, 1
      %p58 = por %p56, %p57
      %p60 = scmp.ne.s32.totalorder %s43, %s59
      %p61 = scmp.eq.s32.totalorder %s23, 0
      %p62 = por %p60, %p61
      %s63 = ssub.s32 %s25, %s32
      %p64 = scmp.eq.s32.totalorder %s63, 0
      %s66 = sadd.s32 %s65, 1
      %s67 = scalar_select %p64, %s65, %s66
      %p70 = pneg %p64
      %p71 = scmp.eq.s32.totalorder %s17, 1
      %p72 = por %p70, %p71
      %p73 = scmp.ne.s32.totalorder %s65, %s68
      %p74 = scmp.eq.s32.totalorder %s17, 0
      %p75 = por %p73, %p74
      %p76 = scmp.ne.s32.totalorder %s65, %s68
      %p77 = scmp.eq.s32.totalorder %s22, 1
      %p78 = por %p76, %p77
      %p79 = scmp.ne.s32.totalorder %s68, %s69
      %p80 = scmp.eq.s32.totalorder %s22, 0
      %p81 = por %p79, %p80
      %p82 = scmp.ne.s32.totalorder %s68, %s69
      %p83 = scmp.eq.s32.totalorder %s23, 1
      %p84 = por %p82, %p83
      %p86 = scmp.ne.s32.totalorder %s69, %s85
      %p87 = scmp.eq.s32.totalorder %s23, 0
      %p88 = por %p86, %p87
      %s89 = ssub.s32 %s25, %s32
      %p90 = scmp.eq.s32.totalorder %s89, 0
      %s92 = sadd.s32 %s91, 1
      %s93 = scalar_select %p90, %s91, %s92
      %p96 = pneg %p90
      %p97 = scmp.eq.s32.totalorder %s17, 1
      %p98 = por %p96, %p97
      %p99 = scmp.ne.s32.totalorder %s91, %s94
      %p100 = scmp.eq.s32.totalorder %s17, 0
      %p101 = por %p99, %p100
      %p102 = scmp.ne.s32.totalorder %s91, %s94
      %p103 = scmp.eq.s32.totalorder %s22, 1
      %p104 = por %p102, %p103
      %p105 = scmp.ne.s32.totalorder %s94, %s95
      %p106 = scmp.eq.s32.totalorder %s22, 0
      %p107 = por %p105, %p106
      %p108 = scmp.ne.s32.totalorder %s94, %s95
      %p109 = scmp.eq.s32.totalorder %s23, 1
      %p110 = por %p108, %p109
      %p112 = scmp.ne.s32.totalorder %s95, %s111
      %p113 = scmp.eq.s32.totalorder %s23, 0
      %p114 = por %p112, %p113
      %s115 = ssub.s32 %s25, %s32
      %p116 = scmp.eq.s32.totalorder %s115, 0
      %s118 = sadd.s32 %s117, 1
      %s119 = scalar_select %p116, %s117, %s118
      %p122 = pneg %p116
      %p123 = scmp.eq.s32.totalorder %s17, 1
      %p124 = por %p122, %p123
      %p125 = scmp.ne.s32.totalorder %s117, %s120
      %p126 = scmp.eq.s32.totalorder %s17, 0
      %p127 = por %p125, %p126
      %p128 = scmp.ne.s32.totalorder %s117, %s120
      %p129 = scmp.eq.s32.totalorder %s22, 1
      %p130 = por %p128, %p129
      %p131 = scmp.ne.s32.totalorder %s120, %s121
      %p132 = scmp.eq.s32.totalorder %s22, 0
      %p133 = por %p131, %p132
      %p134 = scmp.ne.s32.totalorder %s120, %s121
      %p135 = scmp.eq.s32.totalorder %s23, 1
      %p136 = por %p134, %p135
      %p138 = scmp.ne.s32.totalorder %s121, %s137
      %p139 = scmp.eq.s32.totalorder %s23, 0
      %p140 = por %p138, %p139
      %s141 = ssub.s32 %s25, %s32
      %p142 = scmp.eq.s32.totalorder %s141, 0
      %s144 = sadd.s32 %s143, 1
      %s145 = scalar_select %p142, %s143, %s144
      %p148 = pneg %p142
      %p149 = scmp.eq.s32.totalorder %s17, 1
      %p150 = por %p148, %p149
      %p151 = scmp.ne.s32.totalorder %s143, %s146
      %p152 = scmp.eq.s32.totalorder %s17, 0
      %p153 = por %p151, %p152
      %p154 = scmp.ne.s32.totalorder %s143, %s146
      %p155 = scmp.eq.s32.totalorder %s22, 1
      %p156 = por %p154, %p155
      %p157 = scmp.ne.s32.totalorder %s146, %s147
      %p158 = scmp.eq.s32.totalorder %s22, 0
      %p159 = por %p157, %p158
      %p160 = scmp.ne.s32.totalorder %s146, %s147
      %p161 = scmp.eq.s32.totalorder %s23, 1
      %p162 = por %p160, %p161
      %p164 = scmp.ne.s32.totalorder %s147, %s163
      %p165 = scmp.eq.s32.totalorder %s23, 0
      %p166 = por %p164, %p165
      %s167 = ssub.s32 %s25, %s32
      %p168 = scmp.eq.s32.totalorder %s167, 0
      %s170 = sadd.s32 %s169, 1
      %s171 = scalar_select %p168, %s169, %s170
      %p174 = pneg %p168
      %p175 = scmp.eq.s32.totalorder %s17, 1
      %p176 = por %p174, %p175
      %p177 = scmp.ne.s32.totalorder %s169, %s172
      %p178 = scmp.eq.s32.totalorder %s17, 0
      %p179 = por %p177, %p178
      %p180 = scmp.ne.s32.totalorder %s169, %s172
      %p181 = scmp.eq.s32.totalorder %s22, 1
      %p182 = por %p180, %p181
      %p183 = scmp.ne.s32.totalorder %s172, %s173
      %p184 = scmp.eq.s32.totalorder %s22, 0
      %p185 = por %p183, %p184
      %p186 = scmp.ne.s32.totalorder %s172, %s173
      %p187 = scmp.eq.s32.totalorder %s23, 1
      %p188 = por %p186, %p187
      %p190 = scmp.ne.s32.totalorder %s173, %s189
      %p191 = scmp.eq.s32.totalorder %s23, 0
      %p192 = por %p190, %p191
      %s193 = ssub.s32 %s24, %s36
      %p194 = scmp.eq.s32.totalorder %s193, 0
      %s196 = sadd.s32 %s195, 1
      %s197 = scalar_select %p194, %s195, %s196
      %p200 = pneg %p194
      %p201 = scmp.eq.s32.totalorder %s17, 1
      %p202 = por %p200, %p201
      %p203 = scmp.ne.s32.totalorder %s195, %s198
      %p204 = scmp.eq.s32.totalorder %s17, 0
      %p205 = por %p203, %p204
      %p206 = scmp.ne.s32.totalorder %s195, %s198
      %p207 = scmp.eq.s32.totalorder %s22, 1
      %p208 = por %p206, %p207
      %p209 = scmp.ne.s32.totalorder %s198, %s199
      %p210 = scmp.eq.s32.totalorder %s22, 0
      %p211 = por %p209, %p210
      %p212 = scmp.ne.s32.totalorder %s198, %s199
      %p213 = scmp.eq.s32.totalorder %s23, 1
      %p214 = por %p212, %p213
      %p216 = scmp.ne.s32.totalorder %s199, %s215
      %p217 = scmp.eq.s32.totalorder %s23, 0
      %p218 = por %p216, %p217
      %p219 = scmp.le.s32.totalorder 1, %s17
      %p220 = scmp.lt.s32.totalorder %s17, 3
      %p221 = pnand %p219, %p220
      %p222 = pneg %p221
      // Predicated region
      $region9: #{tpu_custom_call.1} parent=5 // pred_check
        _
      $region10: #{tpu_custom_call.1} parent=5 // pred_check_branch
        %224 = sbr.rel (%p221) target = $region12
      $region11: #{tpu_custom_call.1} parent=5 // pred_region
        %s225 = ssub.s32 %s17, 1
        // Predicated region
        $region13: #{tpu_custom_call.1} parent=11 // pred_check
          %p226 = pneg %p55
        $region14: #{tpu_custom_call.1} parent=11 // pred_check_branch
          %228 = sbr.rel (%p226) target = $region16
        $region15: #{tpu_custom_call.1} parent=11 // pred_region
          %s229 = smul.u32 2, %s26
          %s231 = ssub.s32 256, 256
          %232 = vsyncadd [#allocation4], %s231
          %s233 = smul.addr %s229, 128
          %s234 = scalar_lea.hbm %s0, %s233
          %s235 = sshll.u32 [#allocation3], 4
          %s236 = int_to_ptr.vmem [resolvable:$true] %s235
          %241 = dma.hbm_to_vmem [thread:$0]  %s234, 256, %s236, [#allocation4], 128, 128, 8
        $region16: #{tpu_custom_call.1} parent=11 // pred_fallthru
          _
      $region12: #{tpu_custom_call.1} parent=5 // pred_fallthru
        _
      %p242 = scmp.lt.s32.totalorder %s17, 2
      // Predicated region
      $region17: #{tpu_custom_call.1} parent=5 // pred_check
        %p243 = pneg %p242
      $region18: #{tpu_custom_call.1} parent=5 // pred_check_branch
        %245 = sbr.rel (%p243) target = $region20
      $region19: #{tpu_custom_call.1} parent=5 // pred_region
        // Predicated region
        $region21: #{tpu_custom_call.1} parent=19 // pred_check
          %p246 = pneg %p75
        $region22: #{tpu_custom_call.1} parent=19 // pred_check_branch
          %248 = sbr.rel (%p246) target = $region24
        $region23: #{tpu_custom_call.1} parent=19 // pred_region
          %p249 = scmp.lt.s32.totalorder %s25, 1
          %s250 = scalar_select %p249, %s25, 1
          %s251 = smul.addr %s250, 4
          %s252 = smul.addr %s251, 4
          %s253 = scalar_lea.vmem %s1, %s252
        $region24: #{tpu_custom_call.1} parent=19 // pred_fallthru
          _
        // Predicated region
        $region25: #{tpu_custom_call.1} parent=19 // pred_check
          %p254 = pneg %p101
        $region26: #{tpu_custom_call.1} parent=19 // pred_check_branch
          %256 = sbr.rel (%p254) target = $region28
        $region27: #{tpu_custom_call.1} parent=19 // pred_region
          %p257 = scmp.lt.s32.totalorder %s25, 1
          %s258 = scalar_select %p257, %s25, 1
          %s259 = smul.addr %s258, 4
          %s260 = smul.addr %s259, 4
          %s261 = scalar_lea.vmem %s2, %s260
        $region28: #{tpu_custom_call.1} parent=19 // pred_fallthru
          _
        // Predicated region
        $region29: #{tpu_custom_call.1} parent=19 // pred_check
          %p262 = pneg %p127
        $region30: #{tpu_custom_call.1} parent=19 // pred_check_branch
          %264 = sbr.rel (%p262) target = $region32
        $region31: #{tpu_custom_call.1} parent=19 // pred_region
          %p265 = scmp.lt.s32.totalorder %s25, 1
          %s266 = scalar_select %p265, %s25, 1
          %s267 = smul.addr %s266, 4
          %s268 = smul.addr %s267, 4
          %s269 = scalar_lea.vmem %s3, %s268
        $region32: #{tpu_custom_call.1} parent=19 // pred_fallthru
          _
        // Predicated region
        $region33: #{tpu_custom_call.1} parent=19 // pred_check
          %p270 = pneg %p153
        $region34: #{tpu_custom_call.1} parent=19 // pred_check_branch
          %272 = sbr.rel (%p270) target = $region36
        $region35: #{tpu_custom_call.1} parent=19 // pred_region
          %p273 = scmp.lt.s32.totalorder %s25, 1
          %s274 = scalar_select %p273, %s25, 1
          %s275 = smul.addr %s274, 8
          %s276 = smul.addr %s275, 4
          %s277 = scalar_lea.vmem %s4, %s276
        $region36: #{tpu_custom_call.1} parent=19 // pred_fallthru
          _
        // Predicated region
        $region37: #{tpu_custom_call.1} parent=19 // pred_check
          %p278 = pneg %p179
        $region38: #{tpu_custom_call.1} parent=19 // pred_check_branch
          %280 = sbr.rel (%p278) target = $region40
        $region39: #{tpu_custom_call.1} parent=19 // pred_region
          %s281 = sand.u32 %s169, 1
          %s282 = scalar_lea.sflag [#allocation7], %s281
          %s283 = sand.u32 %s169, 1
          %s284 = smul.addr %s283, 8
          %s285 = scalar_lea.vmem [#allocation6], %s284
          %s287 = ssub.s32 128, 128
          %288 = vsyncadd %s282, %s287
          %s289 = smul.addr %s25, 128
          %s290 = scalar_lea.hbm %s5, %s289
          %s292 = sshll.u32 %s285, 4
          %s293 = int_to_ptr.vmem [resolvable:$true] %s292
          %295 = dma.hbm_to_vmem [thread:$0]  %s290, 128, %s293, %s282
        $region40: #{tpu_custom_call.1} parent=19 // pred_fallthru
          _
      $region20: #{tpu_custom_call.1} parent=5 // pred_fallthru
        _
      %p296 = scmp.le.s32.totalorder 1, %s17
      %p297 = scmp.lt.s32.totalorder %s17, 3
      %p298 = pnand %p296, %p297
      %p299 = pneg %p298
      // Predicated region
      $region41: #{tpu_custom_call.1} parent=5 // pred_check
        _
      $region42: #{tpu_custom_call.1} parent=5 // pred_check_branch
        %301 = sbr.rel (%p298) target = $region44
      $region43: #{tpu_custom_call.1} parent=5 // pred_region
        %s302 = ssub.s32 %s17, 1
        // Predicated region
        $region45: #{tpu_custom_call.1} parent=43 // pred_check
          %p303 = pneg %p55
        $region46: #{tpu_custom_call.1} parent=43 // pred_check_branch
          %305 = sbr.rel (%p303) target = $region48
        $region47: #{tpu_custom_call.1} parent=43 // pred_region
          %306 = dma.done [#allocation4], 256
        $region48: #{tpu_custom_call.1} parent=43 // pred_fallthru
          _
        %s307 = sand.u32 %s172, 1
        %s308 = scalar_lea.sflag [#allocation7], %s307
        %s309 = sand.u32 %s172, 1
        %s310 = smul.addr %s309, 8
        %s311 = scalar_lea.vmem [#allocation6], %s310
        // Predicated region
        $region49: #{tpu_custom_call.1} parent=43 // pred_check
          %p312 = pneg %p185
        $region50: #{tpu_custom_call.1} parent=43 // pred_check_branch
          %314 = sbr.rel (%p312) target = $region52
        $region51: #{tpu_custom_call.1} parent=43 // pred_region
          %315 = dma.done %s308, 128
        $region52: #{tpu_custom_call.1} parent=43 // pred_fallthru
          _
        %p316 = pneg %p55
        %p317 = pneg %p52
        %p318 = scmp.lt.s32.totalorder %s27, 1
        %s319 = scalar_select %p318, %s27, 1
        %s320 = smul.addr %s319, 4
        %s321 = smul.addr %s320, 4
        %s322 = scalar_lea.vmem %s1, %s321
        %p323 = pneg %p81
        %p324 = pneg %p78
        %p325 = scmp.lt.s32.totalorder %s27, 1
        %s326 = scalar_select %p325, %s27, 1
        %s327 = smul.addr %s326, 4
        %s328 = smul.addr %s327, 4
        %s329 = scalar_lea.vmem %s2, %s328
        %p330 = pneg %p107
        %p331 = pneg %p104
        %p332 = scmp.lt.s32.totalorder %s27, 1
        %s333 = scalar_select %p332, %s27, 1
        %s334 = smul.addr %s333, 4
        %s335 = smul.addr %s334, 4
        %s336 = scalar_lea.vmem %s3, %s335
        %p337 = pneg %p133
        %p338 = pneg %p130
        %p339 = scmp.lt.s32.totalorder %s27, 1
        %s340 = scalar_select %p339, %s27, 1
        %s341 = smul.addr %s340, 8
        %s342 = smul.addr %s341, 4
        %s343 = scalar_lea.vmem %s4, %s342
        %p344 = pneg %p159
        %p345 = pneg %p156
        %s346 = sand.u32 %s172, 1
        %s347 = scalar_lea.sflag [#allocation7], %s346
        %s348 = sand.u32 %s172, 1
        %s349 = smul.addr %s348, 8
        %s350 = scalar_lea.vmem [#allocation6], %s349
        %p351 = pneg %p185
        %p352 = pneg %p182
        %p353 = pneg %p211
        %p354 = pneg %p208
        %s355 = smul.u32 2, %s26
        %p356 = scmp.lt.s32.totalorder %s27, 1
        %s357 = scalar_select %p356, %s27, 1
        %s358 = smul.addr %s357, 4
        %s359 = smul.addr %s358, 4
        %s360 = scalar_lea.vmem %s1, %s359
        %p361 = scmp.lt.s32.totalorder %s27, 1
        %s362 = scalar_select %p361, %s27, 1
        %s363 = smul.addr %s362, 4
        %s364 = smul.addr %s363, 4
        %s365 = scalar_lea.vmem %s2, %s364
        %p366 = scmp.lt.s32.totalorder %s27, 1
        %s367 = scalar_select %p366, %s27, 1
        %s368 = smul.addr %s367, 4
        %s369 = smul.addr %s368, 4
        %s370 = scalar_lea.vmem %s3, %s369
        %p371 = scmp.lt.s32.totalorder %s27, 1
        %s372 = scalar_select %p371, %s27, 1
        %s373 = smul.addr %s372, 8
        %s374 = smul.addr %s373, 4
        %s375 = scalar_lea.vmem %s4, %s374
        %s376 = smul.u32 2, %s26
        %p378 = scmp.eq.s32.totalorder %s27, 0
        // Predicated region
        $region53: #{tpu_custom_call.1} parent=43 // pred_check
          %p379 = pneg %p378
        $region54: #{tpu_custom_call.1} parent=43 // pred_check_branch
          %381 = sbr.rel (%p379) target = $region56
        $region55: #{tpu_custom_call.1} parent=43 // pred_region
          %v382 = vld [vmem:[#allocation3] sm:$0xff]
          %v383 = vld [vmem:[#allocation3 + $0x8] sm:$0xff]
          %vm384 = vcmask 261120
          %385 = vst.msk [vmem:[#allocation2] sm:$0xff] %vm384, %v382
          %386 = vst.msk [vmem:[#allocation2 + $0x8] sm:$0xff] %vm384, %v383
        $region56: #{tpu_custom_call.1} parent=43 // pred_fallthru
          _
        %v387 = vld [vmem:[#allocation2] sm:$0xff]
        %v388 = vld [vmem:[#allocation2 + $0x8] sm:$0xff]
        %v389 = vld [vmem:[%s311] sm:$0xff]
        %v390 = vpack.c.bf16 %v388, %v387
        %v391 = vld [vmem:[%s360] sm:$0xf]
        %v392 = vld [vmem:[%s360 + $0x4] sm:$0xf]
        %v393 = vld [vmem:[%s360 + $0x8] sm:$0xf]
        %v394 = vld [vmem:[%s360 + $0xc] sm:$0xf]
        %v395 = vlaneseq
        %v396 = vshrl.u32 %v395, 7
        %v397 = vsub.s32 0, %v396
        %v398 = vrot.slane %v389, %v397
        %v403 = vunpack.c.l.b16 %v391
        %v404 = vunpack.c.l.b16 %v392
        %v405 = vunpack.c.l.b16 %v393
        %v406 = vunpack.c.l.b16 %v394
        %v407 = vpack.c.b16 %v404, %v403
        %v408 = vpack.c.b16 %v406, %v405
        %vm411 = vcmask 261120
        %v413 = vsel %vm411, %v390, 0
        %415 = vmatprep.subr.bf16.mxu0 0
        %416 = vmatpush1.bf16.msra.mxu0 0
        %417 = vmatprep.subr.bf16.mxu0 0
        %418 = vmatpush1.bf16.msra.mxu0 0
        %419 = vmatprep.subr.bf16.mxu0 0
        %420 = vmatpush1.bf16.msra.mxu0 0
        %421 = vmatprep.subr.bf16.mxu0 0
        %422 = vmatpush1.bf16.msra.mxu0 0
        %423 = vmatprep.subr.bf16.mxu0 0
        %424 = vmatpush1.bf16.msra.mxu0 0
        %425 = vmatprep.subr.bf16.mxu0 0
        %426 = vmatpush1.bf16.msra.mxu0 0
        %427 = vmatprep.subr.bf16.mxu0 0
        %428 = vmatpush1.bf16.msra.mxu0 %v408
        %429 = vmatprep.subr.bf16.mxu0 0
        %430 = vmatpush1.bf16.msra.mxu0 %v407
        %431 = vmatprep.subr.bf16.mxu0 0
        %432 = vmatpush2.bf16.msra.mxu0 0
        %433 = vmatprep.subr.bf16.mxu0 0
        %434 = vmatpush2.bf16.msra.mxu0 0
        %435 = vmatprep.subr.bf16.mxu0 0
        %436 = vmatpush2.bf16.msra.mxu0 0
        %437 = vmatprep.subr.bf16.mxu0 0
        %438 = vmatpush2.bf16.msra.mxu0 0
        %439 = vmatprep.subr.bf16.mxu0 0
        %440 = vmatpush2.bf16.msra.mxu0 0
        %441 = vmatprep.subr.bf16.mxu0 0
        %442 = vmatpush2.bf16.msra.mxu0 0
        %443 = vmatprep.subr.bf16.mxu0 0
        %444 = vmatpush2.bf16.msra.mxu0 0
        %445 = vmatprep.subr.bf16.mxu0 0
        %446 = vmatpush2.bf16.msra.mxu0 0
        %447 = vmatprep.mubr.bf16.mxu0 0
        %448 = vmatmul.mubr.bf16.gmra.mxu0 %v413
        %v449 = vpop.f32.mrf.mxu0
        %v450 = vadd.f32 %v398, %v449
        %v451 = vpop.f32.mrf.mxu0
        %v452 = vpop.f32.mrf.mxu0
        %v453 = vadd.f32 %v398, %v452
        %v454 = vpop.f32.mrf.mxu0
        %455 = vdwg.mxu0
        %v456 = vmul.f32 %v450, 0.35355338
        %v457 = vmul.f32 %v453, 0.35355338
        %459 = vrot.lane.b32.xlu0 %v450, 96
        %v460 = vpop.permute.xlu0 %459
        %vm461 = vcmask 64512
        %v463 = vsel %vm461, %v456, 0
        %v465 = vsel %vm461, %v460, 0
        %467 = vmatprep.subr.mxu0 0.0
        %468 = vmatpush1.xpose.msra.mxu0 0.0
        %469 = vmatprep.subr.mxu0 0.0
        %470 = vmatpush1.xpose.msra.mxu0 0.0
        %471 = vmatprep.subr.mxu0 0.0
        %472 = vmatpush1.xpose.msra.mxu0 0.0
        %473 = vmatprep.subr.mxu0 0.0
        %474 = vmatpush1.xpose.msra.mxu0 0.0
        %475 = vmatprep.subr.mxu0 0.0
        %476 = vmatpush1.xpose.msra.mxu0 0.0
        %477 = vmatprep.subr.mxu0 0.0
        %478 = vmatpush1.xpose.msra.mxu0 0.0
        %479 = vmatprep.subr.mxu0 0.0
        %480 = vmatpush1.xpose.msra.mxu0 0.0
        %481 = vmatprep.subr.mxu0 0.0
        %482 = vmatpush1.xpose.msra.mxu0 0.0
        %483 = vmatprep.subr.mxu0 0.0
        %484 = vmatpush1.xpose.msra.mxu0 0.0
        %485 = vmatprep.subr.mxu0 0.0
        %486 = vmatpush1.xpose.msra.mxu0 0.0
        %487 = vmatprep.subr.mxu0 0.0
        %488 = vmatpush1.xpose.msra.mxu0 0.0
        %489 = vmatprep.subr.mxu0 0.0
        %490 = vmatpush1.xpose.msra.mxu0 0.0
        %491 = vmatprep.subr.mxu0 0.0
        %492 = vmatpush1.xpose.msra.mxu0 0.0
        %493 = vmatprep.subr.mxu0 0.0
        %494 = vmatpush1.xpose.msra.mxu0 0.0
        %495 = vmatprep.subr.mxu0 0.0
        %496 = vmatpush1.xpose.msra.mxu0 0.0
        %497 = vmatprep.subr.mxu0 0.0
        %498 = vmatpush1.xpose.msra.mxu0 %v465
        %499 = vmatprep.subr.mxu0 0.0
        %500 = vmatpush2.xpose.msra.mxu0 0.0
        %501 = vmatprep.subr.mxu0 0.0
        %502 = vmatpush2.xpose.msra.mxu0 0.0
        %503 = vmatprep.subr.mxu0 0.0
        %504 = vmatpush2.xpose.msra.mxu0 0.0
        %505 = vmatprep.subr.mxu0 0.0
        %506 = vmatpush2.xpose.msra.mxu0 0.0
        %507 = vmatprep.subr.mxu0 0.0
        %508 = vmatpush2.xpose.msra.mxu0 0.0
        %509 = vmatprep.subr.mxu0 0.0
        %510 = vmatpush2.xpose.msra.mxu0 0.0
        %511 = vmatprep.subr.mxu0 0.0
        %512 = vmatpush2.xpose.msra.mxu0 0.0
        %513 = vmatprep.subr.mxu0 0.0
        %514 = vmatpush2.xpose.msra.mxu0 0.0
        %515 = vmatprep.subr.mxu0 0.0
        %516 = vmatpush2.xpose.msra.mxu0 0.0
        %517 = vmatprep.subr.mxu0 0.0
        %518 = vmatpush2.xpose.msra.mxu0 0.0
        %519 = vmatprep.subr.mxu0 0.0
        %520 = vmatpush2.xpose.msra.mxu0 0.0
        %521 = vmatprep.subr.mxu0 0.0
        %522 = vmatpush2.xpose.msra.mxu0 0.0
        %523 = vmatprep.subr.mxu0 0.0
        %524 = vmatpush2.xpose.msra.mxu0 0.0
        %525 = vmatprep.subr.mxu0 0.0
        %526 = vmatpush2.xpose.msra.mxu0 0.0
        %527 = vmatprep.subr.mxu0 0.0
        %528 = vmatpush2.xpose.msra.mxu0 0.0
        %529 = vmatprep.subr.mxu0 0.0
        %530 = vmatpush2.xpose.msra.mxu0 0.0
        %531 = vmatprep.mubr.f32.mxu0 0.0
        %532 = vmatmul.mubr.f32.gmra.mxu0 %v463
        %v533 = vpop.f32.mrf.mxu0
        %v534 = vadd.f32 0.0, %v533
        %v535 = vpop.f32.mrf.mxu0
        %536 = vdwg.mxu0
        %538 = vrot.lane.b32.xlu0 %v453, 96
        %v539 = vpop.permute.xlu0 %538
        %v541 = vsel %vm461, %v457, 0
        %v543 = vsel %vm461, %v539, 0
        %545 = vmatprep.subr.mxu0 0.0
        %546 = vmatpush1.xpose.msra.mxu0 0.0
        %547 = vmatprep.subr.mxu0 0.0
        %548 = vmatpush1.xpose.msra.mxu0 0.0
        %549 = vmatprep.subr.mxu0 0.0
        %550 = vmatpush1.xpose.msra.mxu0 0.0
        %551 = vmatprep.subr.mxu0 0.0
        %552 = vmatpush1.xpose.msra.mxu0 0.0
        %553 = vmatprep.subr.mxu0 0.0
        %554 = vmatpush1.xpose.msra.mxu0 0.0
        %555 = vmatprep.subr.mxu0 0.0
        %556 = vmatpush1.xpose.msra.mxu0 0.0
        %557 = vmatprep.subr.mxu0 0.0
        %558 = vmatpush1.xpose.msra.mxu0 0.0
        %559 = vmatprep.subr.mxu0 0.0
        %560 = vmatpush1.xpose.msra.mxu0 0.0
        %561 = vmatprep.subr.mxu0 0.0
        %562 = vmatpush1.xpose.msra.mxu0 0.0
        %563 = vmatprep.subr.mxu0 0.0
        %564 = vmatpush1.xpose.msra.mxu0 0.0
        %565 = vmatprep.subr.mxu0 0.0
        %566 = vmatpush1.xpose.msra.mxu0 0.0
        %567 = vmatprep.subr.mxu0 0.0
        %568 = vmatpush1.xpose.msra.mxu0 0.0
        %569 = vmatprep.subr.mxu0 0.0
        %570 = vmatpush1.xpose.msra.mxu0 0.0
        %571 = vmatprep.subr.mxu0 0.0
        %572 = vmatpush1.xpose.msra.mxu0 0.0
        %573 = vmatprep.subr.mxu0 0.0
        %574 = vmatpush1.xpose.msra.mxu0 0.0
        %575 = vmatprep.subr.mxu0 0.0
        %576 = vmatpush1.xpose.msra.mxu0 %v543
        %577 = vmatprep.subr.mxu0 0.0
        %578 = vmatpush2.xpose.msra.mxu0 0.0
        %579 = vmatprep.subr.mxu0 0.0
        %580 = vmatpush2.xpose.msra.mxu0 0.0
        %581 = vmatprep.subr.mxu0 0.0
        %582 = vmatpush2.xpose.msra.mxu0 0.0
        %583 = vmatprep.subr.mxu0 0.0
        %584 = vmatpush2.xpose.msra.mxu0 0.0
        %585 = vmatprep.subr.mxu0 0.0
        %586 = vmatpush2.xpose.msra.mxu0 0.0
        %587 = vmatprep.subr.mxu0 0.0
        %588 = vmatpush2.xpose.msra.mxu0 0.0
        %589 = vmatprep.subr.mxu0 0.0
        %590 = vmatpush2.xpose.msra.mxu0 0.0
        %591 = vmatprep.subr.mxu0 0.0
        %592 = vmatpush2.xpose.msra.mxu0 0.0
        %593 = vmatprep.subr.mxu0 0.0
        %594 = vmatpush2.xpose.msra.mxu0 0.0
        %595 = vmatprep.subr.mxu0 0.0
        %596 = vmatpush2.xpose.msra.mxu0 0.0
        %597 = vmatprep.subr.mxu0 0.0
        %598 = vmatpush2.xpose.msra.mxu0 0.0
        %599 = vmatprep.subr.mxu0 0.0
        %600 = vmatpush2.xpose.msra.mxu0 0.0
        %601 = vmatprep.subr.mxu0 0.0
        %602 = vmatpush2.xpose.msra.mxu0 0.0
        %603 = vmatprep.subr.mxu0 0.0
        %604 = vmatpush2.xpose.msra.mxu0 0.0
        %605 = vmatprep.subr.mxu0 0.0
        %606 = vmatpush2.xpose.msra.mxu0 0.0
        %607 = vmatprep.subr.mxu0 0.0
        %608 = vmatpush2.xpose.msra.mxu0 0.0
        %609 = vmatprep.mubr.f32.mxu0 0.0
        %610 = vmatmul.mubr.f32.gmra.mxu0 %v541
        %v611 = vpop.f32.mrf.mxu0
        %v612 = vadd.f32 0.0, %v611
        %v613 = vpop.f32.mrf.mxu0
        %614 = vdwg.mxu0
        %v615 = vsel %vm461, %v534, -inf
        %616 = vmax.xlane.f32.xlu0 %v615
        %v617 = vpop.xlane.xlu0 %616
        %v618 = vsel %vm461, %v612, -inf
        %619 = vmax.xlane.f32.xlu0 %v618
        %v620 = vpop.xlane.xlu0 %619
        %v621 = vsub.f32 %v534, %v617
        %v622 = vsub.f32 %v612, %v620
        %v623 = vmul.f32 %v621, 1.442695
        %v624 = vpow.pop %v623
        %v625 = vmul.f32 %v622, 1.442695
        %v626 = vpow.pop %v625
        %v627 = vsel %vm461, %v624, 0.0
        %628 = vadd.xlane.f32.xlu0 %v627
        %v629 = vpop.xlane.xlu0 %628
        %v630 = vsel %vm461, %v626, 0.0
        %631 = vadd.xlane.f32.xlu0 %v630
        %v632 = vpop.xlane.xlu0 %631
        %v633 = vrcp.pop %v629
        %v634 = vmul.f32 %v624, %v633
        %v635 = vrcp.pop %v632
        %v636 = vmul.f32 %v626, %v635
        %637 = vrot.lane.b32.xlu0 %v450, 64
        %v638 = vpop.permute.xlu0 %637
        %v641 = vsel %vm461, %v634, 0
        %643 = vmatprep.subr.mxu0 0.0
        %644 = vmatpush1.msra.mxu0 0.0
        %645 = vmatprep.subr.mxu0 0.0
        %646 = vmatpush1.msra.mxu0 0.0
        %647 = vmatprep.subr.mxu0 0.0
        %648 = vmatpush1.msra.mxu0 0.0
        %649 = vmatprep.subr.mxu0 0.0
        %650 = vmatpush1.msra.mxu0 0.0
        %651 = vmatprep.subr.mxu0 0.0
        %652 = vmatpush1.msra.mxu0 0.0
        %653 = vmatprep.subr.mxu0 0.0
        %654 = vmatpush1.msra.mxu0 0.0
        %655 = vmatprep.subr.mxu0 0.0
        %656 = vmatpush1.msra.mxu0 0.0
        %657 = vmatprep.subr.mxu0 0.0
        %658 = vmatpush1.msra.mxu0 0.0
        %659 = vmatprep.subr.mxu0 0.0
        %660 = vmatpush1.msra.mxu0 0.0
        %661 = vmatprep.subr.mxu0 0.0
        %662 = vmatpush1.msra.mxu0 0.0
        %663 = vmatprep.subr.mxu0 0.0
        %664 = vmatpush1.msra.mxu0 0.0
        %665 = vmatprep.subr.mxu0 0.0
        %666 = vmatpush1.msra.mxu0 0.0
        %667 = vmatprep.subr.mxu0 0.0
        %668 = vmatpush1.msra.mxu0 0.0
        %669 = vmatprep.subr.mxu0 0.0
        %670 = vmatpush1.msra.mxu0 0.0
        %671 = vmatprep.subr.mxu0 0.0
        %672 = vmatpush1.msra.mxu0 0.0
        %673 = vmatprep.subr.mxu0 0.0
        %674 = vmatpush1.msra.mxu0 %v638
        %675 = vmatprep.subr.mxu0 0.0
        %676 = vmatpush2.msra.mxu0 0.0
        %677 = vmatprep.subr.mxu0 0.0
        %678 = vmatpush2.msra.mxu0 0.0
        %679 = vmatprep.subr.mxu0 0.0
        %680 = vmatpush2.msra.mxu0 0.0
        %681 = vmatprep.subr.mxu0 0.0
        %682 = vmatpush2.msra.mxu0 0.0
        %683 = vmatprep.subr.mxu0 0.0
        %684 = vmatpush2.msra.mxu0 0.0
        %685 = vmatprep.subr.mxu0 0.0
        %686 = vmatpush2.msra.mxu0 0.0
        %687 = vmatprep.subr.mxu0 0.0
        %688 = vmatpush2.msra.mxu0 0.0
        %689 = vmatprep.subr.mxu0 0.0
        %690 = vmatpush2.msra.mxu0 0.0
        %691 = vmatprep.subr.mxu0 0.0
        %692 = vmatpush2.msra.mxu0 0.0
        %693 = vmatprep.subr.mxu0 0.0
        %694 = vmatpush2.msra.mxu0 0.0
        %695 = vmatprep.subr.mxu0 0.0
        %696 = vmatpush2.msra.mxu0 0.0
        %697 = vmatprep.subr.mxu0 0.0
        %698 = vmatpush2.msra.mxu0 0.0
        %699 = vmatprep.subr.mxu0 0.0
        %700 = vmatpush2.msra.mxu0 0.0
        %701 = vmatprep.subr.mxu0 0.0
        %702 = vmatpush2.msra.mxu0 0.0
        %703 = vmatprep.subr.mxu0 0.0
        %704 = vmatpush2.msra.mxu0 0.0
        %705 = vmatprep.subr.mxu0 0.0
        %706 = vmatpush2.msra.mxu0 0.0
        %707 = vmatprep.mubr.f32.mxu0 0.0
        %708 = vmatmul.mubr.f32.gmra.mxu0 %v641
        %v709 = vpop.f32.mrf.mxu0
        %v710 = vadd.f32 0.0, %v709
        %v711 = vpop.f32.mrf.mxu0
        %712 = vdwg.mxu0
        %713 = vrot.lane.b32.xlu0 %v453, 64
        %v714 = vpop.permute.xlu0 %713
        %v717 = vsel %vm461, %v636, 0
        %719 = vmatprep.subr.mxu0 0.0
        %720 = vmatpush1.msra.mxu0 0.0
        %721 = vmatprep.subr.mxu0 0.0
        %722 = vmatpush1.msra.mxu0 0.0
        %723 = vmatprep.subr.mxu0 0.0
        %724 = vmatpush1.msra.mxu0 0.0
        %725 = vmatprep.subr.mxu0 0.0
        %726 = vmatpush1.msra.mxu0 0.0
        %727 = vmatprep.subr.mxu0 0.0
        %728 = vmatpush1.msra.mxu0 0.0
        %729 = vmatprep.subr.mxu0 0.0
        %730 = vmatpush1.msra.mxu0 0.0
        %731 = vmatprep.subr.mxu0 0.0
        %732 = vmatpush1.msra.mxu0 0.0
        %733 = vmatprep.subr.mxu0 0.0
        %734 = vmatpush1.msra.mxu0 0.0
        %735 = vmatprep.subr.mxu0 0.0
        %736 = vmatpush1.msra.mxu0 0.0
        %737 = vmatprep.subr.mxu0 0.0
        %738 = vmatpush1.msra.mxu0 0.0
        %739 = vmatprep.subr.mxu0 0.0
        %740 = vmatpush1.msra.mxu0 0.0
        %741 = vmatprep.subr.mxu0 0.0
        %742 = vmatpush1.msra.mxu0 0.0
        %743 = vmatprep.subr.mxu0 0.0
        %744 = vmatpush1.msra.mxu0 0.0
        %745 = vmatprep.subr.mxu0 0.0
        %746 = vmatpush1.msra.mxu0 0.0
        %747 = vmatprep.subr.mxu0 0.0
        %748 = vmatpush1.msra.mxu0 0.0
        %749 = vmatprep.subr.mxu0 0.0
        %750 = vmatpush1.msra.mxu0 %v714
        %751 = vmatprep.subr.mxu0 0.0
        %752 = vmatpush2.msra.mxu0 0.0
        %753 = vmatprep.subr.mxu0 0.0
        %754 = vmatpush2.msra.mxu0 0.0
        %755 = vmatprep.subr.mxu0 0.0
        %756 = vmatpush2.msra.mxu0 0.0
        %757 = vmatprep.subr.mxu0 0.0
        %758 = vmatpush2.msra.mxu0 0.0
        %759 = vmatprep.subr.mxu0 0.0
        %760 = vmatpush2.msra.mxu0 0.0
        %761 = vmatprep.subr.mxu0 0.0
        %762 = vmatpush2.msra.mxu0 0.0
        %763 = vmatprep.subr.mxu0 0.0
        %764 = vmatpush2.msra.mxu0 0.0
        %765 = vmatprep.subr.mxu0 0.0
        %766 = vmatpush2.msra.mxu0 0.0
        %767 = vmatprep.subr.mxu0 0.0
        %768 = vmatpush2.msra.mxu0 0.0
        %769 = vmatprep.subr.mxu0 0.0
        %770 = vmatpush2.msra.mxu0 0.0
        %771 = vmatprep.subr.mxu0 0.0
        %772 = vmatpush2.msra.mxu0 0.0
        %773 = vmatprep.subr.mxu0 0.0
        %774 = vmatpush2.msra.mxu0 0.0
        %775 = vmatprep.subr.mxu0 0.0
        %776 = vmatpush2.msra.mxu0 0.0
        %777 = vmatprep.subr.mxu0 0.0
        %778 = vmatpush2.msra.mxu0 0.0
        %779 = vmatprep.subr.mxu0 0.0
        %780 = vmatpush2.msra.mxu0 0.0
        %781 = vmatprep.subr.mxu0 0.0
        %782 = vmatpush2.msra.mxu0 0.0
        %783 = vmatprep.mubr.f32.mxu0 0.0
        %784 = vmatmul.mubr.f32.gmra.mxu0 %v717
        %v785 = vpop.f32.mrf.mxu0
        %v786 = vadd.f32 0.0, %v785
        %v787 = vpop.f32.mrf.mxu0
        %788 = vdwg.mxu0
        %789 = vrot.lane.b32.xlu0 %v456, 120
        %v790 = vpop.permute.xlu0 %789
        %791 = vrot.lane.b32.xlu0 %v450, 88
        %v792 = vpop.permute.xlu0 %791
        %v793 = vsel %vm461, %v790, 0
        %v795 = vsel %vm461, %v792, 0
        %797 = vmatprep.subr.mxu0 0.0
        %798 = vmatpush1.xpose.msra.mxu0 0.0
        %799 = vmatprep.subr.mxu0 0.0
        %800 = vmatpush1.xpose.msra.mxu0 0.0
        %801 = vmatprep.subr.mxu0 0.0
        %802 = vmatpush1.xpose.msra.mxu0 0.0
        %803 = vmatprep.subr.mxu0 0.0
        %804 = vmatpush1.xpose.msra.mxu0 0.0
        %805 = vmatprep.subr.mxu0 0.0
        %806 = vmatpush1.xpose.msra.mxu0 0.0
        %807 = vmatprep.subr.mxu0 0.0
        %808 = vmatpush1.xpose.msra.mxu0 0.0
        %809 = vmatprep.subr.mxu0 0.0
        %810 = vmatpush1.xpose.msra.mxu0 0.0
        %811 = vmatprep.subr.mxu0 0.0
        %812 = vmatpush1.xpose.msra.mxu0 0.0
        %813 = vmatprep.subr.mxu0 0.0
        %814 = vmatpush1.xpose.msra.mxu0 0.0
        %815 = vmatprep.subr.mxu0 0.0
        %816 = vmatpush1.xpose.msra.mxu0 0.0
        %817 = vmatprep.subr.mxu0 0.0
        %818 = vmatpush1.xpose.msra.mxu0 0.0
        %819 = vmatprep.subr.mxu0 0.0
        %820 = vmatpush1.xpose.msra.mxu0 0.0
        %821 = vmatprep.subr.mxu0 0.0
        %822 = vmatpush1.xpose.msra.mxu0 0.0
        %823 = vmatprep.subr.mxu0 0.0
        %824 = vmatpush1.xpose.msra.mxu0 0.0
        %825 = vmatprep.subr.mxu0 0.0
        %826 = vmatpush1.xpose.msra.mxu0 0.0
        %827 = vmatprep.subr.mxu0 0.0
        %828 = vmatpush1.xpose.msra.mxu0 %v795
        %829 = vmatprep.subr.mxu0 0.0
        %830 = vmatpush2.xpose.msra.mxu0 0.0
        %831 = vmatprep.subr.mxu0 0.0
        %832 = vmatpush2.xpose.msra.mxu0 0.0
        %833 = vmatprep.subr.mxu0 0.0
        %834 = vmatpush2.xpose.msra.mxu0 0.0
        %835 = vmatprep.subr.mxu0 0.0
        %836 = vmatpush2.xpose.msra.mxu0 0.0
        %837 = vmatprep.subr.mxu0 0.0
        %838 = vmatpush2.xpose.msra.mxu0 0.0
        %839 = vmatprep.subr.mxu0 0.0
        %840 = vmatpush2.xpose.msra.mxu0 0.0
        %841 = vmatprep.subr.mxu0 0.0
        %842 = vmatpush2.xpose.msra.mxu0 0.0
        %843 = vmatprep.subr.mxu0 0.0
        %844 = vmatpush2.xpose.msra.mxu0 0.0
        %845 = vmatprep.subr.mxu0 0.0
        %846 = vmatpush2.xpose.msra.mxu0 0.0
        %847 = vmatprep.subr.mxu0 0.0
        %848 = vmatpush2.xpose.msra.mxu0 0.0
        %849 = vmatprep.subr.mxu0 0.0
        %850 = vmatpush2.xpose.msra.mxu0 0.0
        %851 = vmatprep.subr.mxu0 0.0
        %852 = vmatpush2.xpose.msra.mxu0 0.0
        %853 = vmatprep.subr.mxu0 0.0
        %854 = vmatpush2.xpose.msra.mxu0 0.0
        %855 = vmatprep.subr.mxu0 0.0
        %856 = vmatpush2.xpose.msra.mxu0 0.0
        %857 = vmatprep.subr.mxu0 0.0
        %858 = vmatpush2.xpose.msra.mxu0 0.0
        %859 = vmatprep.subr.mxu0 0.0
        %860 = vmatpush2.xpose.msra.mxu0 0.0
        %861 = vmatprep.mubr.f32.mxu0 0.0
        %862 = vmatmul.mubr.f32.gmra.mxu0 %v793
        %v863 = vpop.f32.mrf.mxu0
        %v864 = vadd.f32 0.0, %v863
        %v865 = vpop.f32.mrf.mxu0
        %866 = vdwg.mxu0
        %867 = vrot.lane.b32.xlu0 %v457, 120
        %v868 = vpop.permute.xlu0 %867
        %869 = vrot.lane.b32.xlu0 %v453, 88
        %v870 = vpop.permute.xlu0 %869
        %v871 = vsel %vm461, %v868, 0
        %v873 = vsel %vm461, %v870, 0
        %875 = vmatprep.subr.mxu0 0.0
        %876 = vmatpush1.xpose.msra.mxu0 0.0
        %877 = vmatprep.subr.mxu0 0.0
        %878 = vmatpush1.xpose.msra.mxu0 0.0
        %879 = vmatprep.subr.mxu0 0.0
        %880 = vmatpush1.xpose.msra.mxu0 0.0
        %881 = vmatprep.subr.mxu0 0.0
        %882 = vmatpush1.xpose.msra.mxu0 0.0
        %883 = vmatprep.subr.mxu0 0.0
        %884 = vmatpush1.xpose.msra.mxu0 0.0
        %885 = vmatprep.subr.mxu0 0.0
        %886 = vmatpush1.xpose.msra.mxu0 0.0
        %887 = vmatprep.subr.mxu0 0.0
        %888 = vmatpush1.xpose.msra.mxu0 0.0
        %889 = vmatprep.subr.mxu0 0.0
        %890 = vmatpush1.xpose.msra.mxu0 0.0
        %891 = vmatprep.subr.mxu0 0.0
        %892 = vmatpush1.xpose.msra.mxu0 0.0
        %893 = vmatprep.subr.mxu0 0.0
        %894 = vmatpush1.xpose.msra.mxu0 0.0
        %895 = vmatprep.subr.mxu0 0.0
        %896 = vmatpush1.xpose.msra.mxu0 0.0
        %897 = vmatprep.subr.mxu0 0.0
        %898 = vmatpush1.xpose.msra.mxu0 0.0
        %899 = vmatprep.subr.mxu0 0.0
        %900 = vmatpush1.xpose.msra.mxu0 0.0
        %901 = vmatprep.subr.mxu0 0.0
        %902 = vmatpush1.xpose.msra.mxu0 0.0
        %903 = vmatprep.subr.mxu0 0.0
        %904 = vmatpush1.xpose.msra.mxu0 0.0
        %905 = vmatprep.subr.mxu0 0.0
        %906 = vmatpush1.xpose.msra.mxu0 %v873
        %907 = vmatprep.subr.mxu0 0.0
        %908 = vmatpush2.xpose.msra.mxu0 0.0
        %909 = vmatprep.subr.mxu0 0.0
        %910 = vmatpush2.xpose.msra.mxu0 0.0
        %911 = vmatprep.subr.mxu0 0.0
        %912 = vmatpush2.xpose.msra.mxu0 0.0
        %913 = vmatprep.subr.mxu0 0.0
        %914 = vmatpush2.xpose.msra.mxu0 0.0
        %915 = vmatprep.subr.mxu0 0.0
        %916 = vmatpush2.xpose.msra.mxu0 0.0
        %917 = vmatprep.subr.mxu0 0.0
        %918 = vmatpush2.xpose.msra.mxu0 0.0
        %919 = vmatprep.subr.mxu0 0.0
        %920 = vmatpush2.xpose.msra.mxu0 0.0
        %921 = vmatprep.subr.mxu0 0.0
        %922 = vmatpush2.xpose.msra.mxu0 0.0
        %923 = vmatprep.subr.mxu0 0.0
        %924 = vmatpush2.xpose.msra.mxu0 0.0
        %925 = vmatprep.subr.mxu0 0.0
        %926 = vmatpush2.xpose.msra.mxu0 0.0
        %927 = vmatprep.subr.mxu0 0.0
        %928 = vmatpush2.xpose.msra.mxu0 0.0
        %929 = vmatprep.subr.mxu0 0.0
        %930 = vmatpush2.xpose.msra.mxu0 0.0
        %931 = vmatprep.subr.mxu0 0.0
        %932 = vmatpush2.xpose.msra.mxu0 0.0
        %933 = vmatprep.subr.mxu0 0.0
        %934 = vmatpush2.xpose.msra.mxu0 0.0
        %935 = vmatprep.subr.mxu0 0.0
        %936 = vmatpush2.xpose.msra.mxu0 0.0
        %937 = vmatprep.subr.mxu0 0.0
        %938 = vmatpush2.xpose.msra.mxu0 0.0
        %939 = vmatprep.mubr.f32.mxu0 0.0
        %940 = vmatmul.mubr.f32.gmra.mxu0 %v871
        %v941 = vpop.f32.mrf.mxu0
        %v942 = vadd.f32 0.0, %v941
        %v943 = vpop.f32.mrf.mxu0
        %944 = vdwg.mxu0
        %v945 = vsel %vm461, %v864, -inf
        %946 = vmax.xlane.f32.xlu0 %v945
        %v947 = vpop.xlane.xlu0 %946
        %v948 = vsel %vm461, %v942, -inf
        %949 = vmax.xlane.f32.xlu0 %v948
        %v950 = vpop.xlane.xlu0 %949
        %v951 = vsub.f32 %v864, %v947
        %v952 = vsub.f32 %v942, %v950
        %v953 = vmul.f32 %v951, 1.442695
        %v954 = vpow.pop %v953
        %v955 = vmul.f32 %v952, 1.442695
        %v956 = vpow.pop %v955
        %v957 = vsel %vm461, %v954, 0.0
        %958 = vadd.xlane.f32.xlu0 %v957
        %v959 = vpop.xlane.xlu0 %958
        %v960 = vsel %vm461, %v956, 0.0
        %961 = vadd.xlane.f32.xlu0 %v960
        %v962 = vpop.xlane.xlu0 %961
        %v963 = vrcp.pop %v959
        %v964 = vmul.f32 %v954, %v963
        %v965 = vrcp.pop %v962
        %v966 = vmul.f32 %v956, %v965
        %967 = vrot.lane.b32.xlu0 %v450, 56
        %v968 = vpop.permute.xlu0 %967
        %v971 = vsel %vm461, %v964, 0
        %973 = vmatprep.subr.mxu0 0.0
        %974 = vmatpush1.msra.mxu0 0.0
        %975 = vmatprep.subr.mxu0 0.0
        %976 = vmatpush1.msra.mxu0 0.0
        %977 = vmatprep.subr.mxu0 0.0
        %978 = vmatpush1.msra.mxu0 0.0
        %979 = vmatprep.subr.mxu0 0.0
        %980 = vmatpush1.msra.mxu0 0.0
        %981 = vmatprep.subr.mxu0 0.0
        %982 = vmatpush1.msra.mxu0 0.0
        %983 = vmatprep.subr.mxu0 0.0
        %984 = vmatpush1.msra.mxu0 0.0
        %985 = vmatprep.subr.mxu0 0.0
        %986 = vmatpush1.msra.mxu0 0.0
        %987 = vmatprep.subr.mxu0 0.0
        %988 = vmatpush1.msra.mxu0 0.0
        %989 = vmatprep.subr.mxu0 0.0
        %990 = vmatpush1.msra.mxu0 0.0
        %991 = vmatprep.subr.mxu0 0.0
        %992 = vmatpush1.msra.mxu0 0.0
        %993 = vmatprep.subr.mxu0 0.0
        %994 = vmatpush1.msra.mxu0 0.0
        %995 = vmatprep.subr.mxu0 0.0
        %996 = vmatpush1.msra.mxu0 0.0
        %997 = vmatprep.subr.mxu0 0.0
        %998 = vmatpush1.msra.mxu0 0.0
        %999 = vmatprep.subr.mxu0 0.0
        %1000 = vmatpush1.msra.mxu0 0.0
        %1001 = vmatprep.subr.mxu0 0.0
        %1002 = vmatpush1.msra.mxu0 0.0
        %1003 = vmatprep.subr.mxu0 0.0
        %1004 = vmatpush1.msra.mxu0 %v968
        %1005 = vmatprep.subr.mxu0 0.0
        %1006 = vmatpush2.msra.mxu0 0.0
        %1007 = vmatprep.subr.mxu0 0.0
        %1008 = vmatpush2.msra.mxu0 0.0
        %1009 = vmatprep.subr.mxu0 0.0
        %1010 = vmatpush2.msra.mxu0 0.0
        %1011 = vmatprep.subr.mxu0 0.0
        %1012 = vmatpush2.msra.mxu0 0.0
        %1013 = vmatprep.subr.mxu0 0.0
        %1014 = vmatpush2.msra.mxu0 0.0
        %1015 = vmatprep.subr.mxu0 0.0
        %1016 = vmatpush2.msra.mxu0 0.0
        %1017 = vmatprep.subr.mxu0 0.0
        %1018 = vmatpush2.msra.mxu0 0.0
        %1019 = vmatprep.subr.mxu0 0.0
        %1020 = vmatpush2.msra.mxu0 0.0
        %1021 = vmatprep.subr.mxu0 0.0
        %1022 = vmatpush2.msra.mxu0 0.0
        %1023 = vmatprep.subr.mxu0 0.0
        %1024 = vmatpush2.msra.mxu0 0.0
        %1025 = vmatprep.subr.mxu0 0.0
        %1026 = vmatpush2.msra.mxu0 0.0
        %1027 = vmatprep.subr.mxu0 0.0
        %1028 = vmatpush2.msra.mxu0 0.0
        %1029 = vmatprep.subr.mxu0 0.0
        %1030 = vmatpush2.msra.mxu0 0.0
        %1031 = vmatprep.subr.mxu0 0.0
        %1032 = vmatpush2.msra.mxu0 0.0
        %1033 = vmatprep.subr.mxu0 0.0
        %1034 = vmatpush2.msra.mxu0 0.0
        %1035 = vmatprep.subr.mxu0 0.0
        %1036 = vmatpush2.msra.mxu0 0.0
        %1037 = vmatprep.mubr.f32.mxu0 0.0
        %1038 = vmatmul.mubr.f32.gmra.mxu0 %v971
        %v1039 = vpop.f32.mrf.mxu0
        %v1040 = vadd.f32 0.0, %v1039
        %v1041 = vpop.f32.mrf.mxu0
        %1042 = vdwg.mxu0
        %1043 = vrot.lane.b32.xlu0 %v453, 56
        %v1044 = vpop.permute.xlu0 %1043
        %v1047 = vsel %vm461, %v966, 0
        %1049 = vmatprep.subr.mxu0 0.0
        %1050 = vmatpush1.msra.mxu0 0.0
        %1051 = vmatprep.subr.mxu0 0.0
        %1052 = vmatpush1.msra.mxu0 0.0
        %1053 = vmatprep.subr.mxu0 0.0
        %1054 = vmatpush1.msra.mxu0 0.0
        %1055 = vmatprep.subr.mxu0 0.0
        %1056 = vmatpush1.msra.mxu0 0.0
        %1057 = vmatprep.subr.mxu0 0.0
        %1058 = vmatpush1.msra.mxu0 0.0
        %1059 = vmatprep.subr.mxu0 0.0
        %1060 = vmatpush1.msra.mxu0 0.0
        %1061 = vmatprep.subr.mxu0 0.0
        %1062 = vmatpush1.msra.mxu0 0.0
        %1063 = vmatprep.subr.mxu0 0.0
        %1064 = vmatpush1.msra.mxu0 0.0
        %1065 = vmatprep.subr.mxu0 0.0
        %1066 = vmatpush1.msra.mxu0 0.0
        %1067 = vmatprep.subr.mxu0 0.0
        %1068 = vmatpush1.msra.mxu0 0.0
        %1069 = vmatprep.subr.mxu0 0.0
        %1070 = vmatpush1.msra.mxu0 0.0
        %1071 = vmatprep.subr.mxu0 0.0
        %1072 = vmatpush1.msra.mxu0 0.0
        %1073 = vmatprep.subr.mxu0 0.0
        %1074 = vmatpush1.msra.mxu0 0.0
        %1075 = vmatprep.subr.mxu0 0.0
        %1076 = vmatpush1.msra.mxu0 0.0
        %1077 = vmatprep.subr.mxu0 0.0
        %1078 = vmatpush1.msra.mxu0 0.0
        %1079 = vmatprep.subr.mxu0 0.0
        %1080 = vmatpush1.msra.mxu0 %v1044
        %1081 = vmatprep.subr.mxu0 0.0
        %1082 = vmatpush2.msra.mxu0 0.0
        %1083 = vmatprep.subr.mxu0 0.0
        %1084 = vmatpush2.msra.mxu0 0.0
        %1085 = vmatprep.subr.mxu0 0.0
        %1086 = vmatpush2.msra.mxu0 0.0
        %1087 = vmatprep.subr.mxu0 0.0
        %1088 = vmatpush2.msra.mxu0 0.0
        %1089 = vmatprep.subr.mxu0 0.0
        %1090 = vmatpush2.msra.mxu0 0.0
        %1091 = vmatprep.subr.mxu0 0.0
        %1092 = vmatpush2.msra.mxu0 0.0
        %1093 = vmatprep.subr.mxu0 0.0
        %1094 = vmatpush2.msra.mxu0 0.0
        %1095 = vmatprep.subr.mxu0 0.0
        %1096 = vmatpush2.msra.mxu0 0.0
        %1097 = vmatprep.subr.mxu0 0.0
        %1098 = vmatpush2.msra.mxu0 0.0
        %1099 = vmatprep.subr.mxu0 0.0
        %1100 = vmatpush2.msra.mxu0 0.0
        %1101 = vmatprep.subr.mxu0 0.0
        %1102 = vmatpush2.msra.mxu0 0.0
        %1103 = vmatprep.subr.mxu0 0.0
        %1104 = vmatpush2.msra.mxu0 0.0
        %1105 = vmatprep.subr.mxu0 0.0
        %1106 = vmatpush2.msra.mxu0 0.0
        %1107 = vmatprep.subr.mxu0 0.0
        %1108 = vmatpush2.msra.mxu0 0.0
        %1109 = vmatprep.subr.mxu0 0.0
        %1110 = vmatpush2.msra.mxu0 0.0
        %1111 = vmatprep.subr.mxu0 0.0
        %1112 = vmatpush2.msra.mxu0 0.0
        %1113 = vmatprep.mubr.f32.mxu0 0.0
        %1114 = vmatmul.mubr.f32.gmra.mxu0 %v1047
        %v1115 = vpop.f32.mrf.mxu0
        %v1116 = vadd.f32 0.0, %v1115
        %v1117 = vpop.f32.mrf.mxu0
        %1118 = vdwg.mxu0
        %1119 = vrot.lane.b32.xlu0 %v456, 112
        %v1120 = vpop.permute.xlu0 %1119
        %1121 = vrot.lane.b32.xlu0 %v450, 80
        %v1122 = vpop.permute.xlu0 %1121
        %v1123 = vsel %vm461, %v1120, 0
        %v1125 = vsel %vm461, %v1122, 0
        %1127 = vmatprep.subr.mxu0 0.0
        %1128 = vmatpush1.xpose.msra.mxu0 0.0
        %1129 = vmatprep.subr.mxu0 0.0
        %1130 = vmatpush1.xpose.msra.mxu0 0.0
        %1131 = vmatprep.subr.mxu0 0.0
        %1132 = vmatpush1.xpose.msra.mxu0 0.0
        %1133 = vmatprep.subr.mxu0 0.0
        %1134 = vmatpush1.xpose.msra.mxu0 0.0
        %1135 = vmatprep.subr.mxu0 0.0
        %1136 = vmatpush1.xpose.msra.mxu0 0.0
        %1137 = vmatprep.subr.mxu0 0.0
        %1138 = vmatpush1.xpose.msra.mxu0 0.0
        %1139 = vmatprep.subr.mxu0 0.0
        %1140 = vmatpush1.xpose.msra.mxu0 0.0
        %1141 = vmatprep.subr.mxu0 0.0
        %1142 = vmatpush1.xpose.msra.mxu0 0.0
        %1143 = vmatprep.subr.mxu0 0.0
        %1144 = vmatpush1.xpose.msra.mxu0 0.0
        %1145 = vmatprep.subr.mxu0 0.0
        %1146 = vmatpush1.xpose.msra.mxu0 0.0
        %1147 = vmatprep.subr.mxu0 0.0
        %1148 = vmatpush1.xpose.msra.mxu0 0.0
        %1149 = vmatprep.subr.mxu0 0.0
        %1150 = vmatpush1.xpose.msra.mxu0 0.0
        %1151 = vmatprep.subr.mxu0 0.0
        %1152 = vmatpush1.xpose.msra.mxu0 0.0
        %1153 = vmatprep.subr.mxu0 0.0
        %1154 = vmatpush1.xpose.msra.mxu0 0.0
        %1155 = vmatprep.subr.mxu0 0.0
        %1156 = vmatpush1.xpose.msra.mxu0 0.0
        %1157 = vmatprep.subr.mxu0 0.0
        %1158 = vmatpush1.xpose.msra.mxu0 %v1125
        %1159 = vmatprep.subr.mxu0 0.0
        %1160 = vmatpush2.xpose.msra.mxu0 0.0
        %1161 = vmatprep.subr.mxu0 0.0
        %1162 = vmatpush2.xpose.msra.mxu0 0.0
        %1163 = vmatprep.subr.mxu0 0.0
        %1164 = vmatpush2.xpose.msra.mxu0 0.0
        %1165 = vmatprep.subr.mxu0 0.0
        %1166 = vmatpush2.xpose.msra.mxu0 0.0
        %1167 = vmatprep.subr.mxu0 0.0
        %1168 = vmatpush2.xpose.msra.mxu0 0.0
        %1169 = vmatprep.subr.mxu0 0.0
        %1170 = vmatpush2.xpose.msra.mxu0 0.0
        %1171 = vmatprep.subr.mxu0 0.0
        %1172 = vmatpush2.xpose.msra.mxu0 0.0
        %1173 = vmatprep.subr.mxu0 0.0
        %1174 = vmatpush2.xpose.msra.mxu0 0.0
        %1175 = vmatprep.subr.mxu0 0.0
        %1176 = vmatpush2.xpose.msra.mxu0 0.0
        %1177 = vmatprep.subr.mxu0 0.0
        %1178 = vmatpush2.xpose.msra.mxu0 0.0
        %1179 = vmatprep.subr.mxu0 0.0
        %1180 = vmatpush2.xpose.msra.mxu0 0.0
        %1181 = vmatprep.subr.mxu0 0.0
        %1182 = vmatpush2.xpose.msra.mxu0 0.0
        %1183 = vmatprep.subr.mxu0 0.0
        %1184 = vmatpush2.xpose.msra.mxu0 0.0
        %1185 = vmatprep.subr.mxu0 0.0
        %1186 = vmatpush2.xpose.msra.mxu0 0.0
        %1187 = vmatprep.subr.mxu0 0.0
        %1188 = vmatpush2.xpose.msra.mxu0 0.0
        %1189 = vmatprep.subr.mxu0 0.0
        %1190 = vmatpush2.xpose.msra.mxu0 0.0
        %1191 = vmatprep.mubr.f32.mxu0 0.0
        %1192 = vmatmul.mubr.f32.gmra.mxu0 %v1123
        %v1193 = vpop.f32.mrf.mxu0
        %v1194 = vadd.f32 0.0, %v1193
        %v1195 = vpop.f32.mrf.mxu0
        %1196 = vdwg.mxu0
        %1197 = vrot.lane.b32.xlu0 %v457, 112
        %v1198 = vpop.permute.xlu0 %1197
        %1199 = vrot.lane.b32.xlu0 %v453, 80
        %v1200 = vpop.permute.xlu0 %1199
        %v1201 = vsel %vm461, %v1198, 0
        %v1203 = vsel %vm461, %v1200, 0
        %1205 = vmatprep.subr.mxu0 0.0
        %1206 = vmatpush1.xpose.msra.mxu0 0.0
        %1207 = vmatprep.subr.mxu0 0.0
        %1208 = vmatpush1.xpose.msra.mxu0 0.0
        %1209 = vmatprep.subr.mxu0 0.0
        %1210 = vmatpush1.xpose.msra.mxu0 0.0
        %1211 = vmatprep.subr.mxu0 0.0
        %1212 = vmatpush1.xpose.msra.mxu0 0.0
        %1213 = vmatprep.subr.mxu0 0.0
        %1214 = vmatpush1.xpose.msra.mxu0 0.0
        %1215 = vmatprep.subr.mxu0 0.0
        %1216 = vmatpush1.xpose.msra.mxu0 0.0
        %1217 = vmatprep.subr.mxu0 0.0
        %1218 = vmatpush1.xpose.msra.mxu0 0.0
        %1219 = vmatprep.subr.mxu0 0.0
        %1220 = vmatpush1.xpose.msra.mxu0 0.0
        %1221 = vmatprep.subr.mxu0 0.0
        %1222 = vmatpush1.xpose.msra.mxu0 0.0
        %1223 = vmatprep.subr.mxu0 0.0
        %1224 = vmatpush1.xpose.msra.mxu0 0.0
        %1225 = vmatprep.subr.mxu0 0.0
        %1226 = vmatpush1.xpose.msra.mxu0 0.0
        %1227 = vmatprep.subr.mxu0 0.0
        %1228 = vmatpush1.xpose.msra.mxu0 0.0
        %1229 = vmatprep.subr.mxu0 0.0
        %1230 = vmatpush1.xpose.msra.mxu0 0.0
        %1231 = vmatprep.subr.mxu0 0.0
        %1232 = vmatpush1.xpose.msra.mxu0 0.0
        %1233 = vmatprep.subr.mxu0 0.0
        %1234 = vmatpush1.xpose.msra.mxu0 0.0
        %1235 = vmatprep.subr.mxu0 0.0
        %1236 = vmatpush1.xpose.msra.mxu0 %v1203
        %1237 = vmatprep.subr.mxu0 0.0
        %1238 = vmatpush2.xpose.msra.mxu0 0.0
        %1239 = vmatprep.subr.mxu0 0.0
        %1240 = vmatpush2.xpose.msra.mxu0 0.0
        %1241 = vmatprep.subr.mxu0 0.0
        %1242 = vmatpush2.xpose.msra.mxu0 0.0
        %1243 = vmatprep.subr.mxu0 0.0
        %1244 = vmatpush2.xpose.msra.mxu0 0.0
        %1245 = vmatprep.subr.mxu0 0.0
        %1246 = vmatpush2.xpose.msra.mxu0 0.0
        %1247 = vmatprep.subr.mxu0 0.0
        %1248 = vmatpush2.xpose.msra.mxu0 0.0
        %1249 = vmatprep.subr.mxu0 0.0
        %1250 = vmatpush2.xpose.msra.mxu0 0.0
        %1251 = vmatprep.subr.mxu0 0.0
        %1252 = vmatpush2.xpose.msra.mxu0 0.0
        %1253 = vmatprep.subr.mxu0 0.0
        %1254 = vmatpush2.xpose.msra.mxu0 0.0
        %1255 = vmatprep.subr.mxu0 0.0
        %1256 = vmatpush2.xpose.msra.mxu0 0.0
        %1257 = vmatprep.subr.mxu0 0.0
        %1258 = vmatpush2.xpose.msra.mxu0 0.0
        %1259 = vmatprep.subr.mxu0 0.0
        %1260 = vmatpush2.xpose.msra.mxu0 0.0
        %1261 = vmatprep.subr.mxu0 0.0
        %1262 = vmatpush2.xpose.msra.mxu0 0.0
        %1263 = vmatprep.subr.mxu0 0.0
        %1264 = vmatpush2.xpose.msra.mxu0 0.0
        %1265 = vmatprep.subr.mxu0 0.0
        %1266 = vmatpush2.xpose.msra.mxu0 0.0
        %1267 = vmatprep.subr.mxu0 0.0
        %1268 = vmatpush2.xpose.msra.mxu0 0.0
        %1269 = vmatprep.mubr.f32.mxu0 0.0
        %1270 = vmatmul.mubr.f32.gmra.mxu0 %v1201
        %v1271 = vpop.f32.mrf.mxu0
        %v1272 = vadd.f32 0.0, %v1271
        %v1273 = vpop.f32.mrf.mxu0
        %1274 = vdwg.mxu0
        %v1275 = vsel %vm461, %v1194, -inf
        %1276 = vmax.xlane.f32.xlu0 %v1275
        %v1277 = vpop.xlane.xlu0 %1276
        %v1278 = vsel %vm461, %v1272, -inf
        %1279 = vmax.xlane.f32.xlu0 %v1278
        %v1280 = vpop.xlane.xlu0 %1279
        %v1281 = vsub.f32 %v1194, %v1277
        %v1282 = vsub.f32 %v1272, %v1280
        %v1283 = vmul.f32 %v1281, 1.442695
        %v1284 = vpow.pop %v1283
        %v1285 = vmul.f32 %v1282, 1.442695
        %v1286 = vpow.pop %v1285
        %v1287 = vsel %vm461, %v1284, 0.0
        %1288 = vadd.xlane.f32.xlu0 %v1287
        %v1289 = vpop.xlane.xlu0 %1288
        %v1290 = vsel %vm461, %v1286, 0.0
        %1291 = vadd.xlane.f32.xlu0 %v1290
        %v1292 = vpop.xlane.xlu0 %1291
        %v1293 = vrcp.pop %v1289
        %v1294 = vmul.f32 %v1284, %v1293
        %v1295 = vrcp.pop %v1292
        %v1296 = vmul.f32 %v1286, %v1295
        %1297 = vrot.lane.b32.xlu0 %v450, 48
        %v1298 = vpop.permute.xlu0 %1297
        %v1301 = vsel %vm461, %v1294, 0
        %1303 = vmatprep.subr.mxu0 0.0
        %1304 = vmatpush1.msra.mxu0 0.0
        %1305 = vmatprep.subr.mxu0 0.0
        %1306 = vmatpush1.msra.mxu0 0.0
        %1307 = vmatprep.subr.mxu0 0.0
        %1308 = vmatpush1.msra.mxu0 0.0
        %1309 = vmatprep.subr.mxu0 0.0
        %1310 = vmatpush1.msra.mxu0 0.0
        %1311 = vmatprep.subr.mxu0 0.0
        %1312 = vmatpush1.msra.mxu0 0.0
        %1313 = vmatprep.subr.mxu0 0.0
        %1314 = vmatpush1.msra.mxu0 0.0
        %1315 = vmatprep.subr.mxu0 0.0
        %1316 = vmatpush1.msra.mxu0 0.0
        %1317 = vmatprep.subr.mxu0 0.0
        %1318 = vmatpush1.msra.mxu0 0.0
        %1319 = vmatprep.subr.mxu0 0.0
        %1320 = vmatpush1.msra.mxu0 0.0
        %1321 = vmatprep.subr.mxu0 0.0
        %1322 = vmatpush1.msra.mxu0 0.0
        %1323 = vmatprep.subr.mxu0 0.0
        %1324 = vmatpush1.msra.mxu0 0.0
        %1325 = vmatprep.subr.mxu0 0.0
        %1326 = vmatpush1.msra.mxu0 0.0
        %1327 = vmatprep.subr.mxu0 0.0
        %1328 = vmatpush1.msra.mxu0 0.0
        %1329 = vmatprep.subr.mxu0 0.0
        %1330 = vmatpush1.msra.mxu0 0.0
        %1331 = vmatprep.subr.mxu0 0.0
        %1332 = vmatpush1.msra.mxu0 0.0
        %1333 = vmatprep.subr.mxu0 0.0
        %1334 = vmatpush1.msra.mxu0 %v1298
        %1335 = vmatprep.subr.mxu0 0.0
        %1336 = vmatpush2.msra.mxu0 0.0
        %1337 = vmatprep.subr.mxu0 0.0
        %1338 = vmatpush2.msra.mxu0 0.0
        %1339 = vmatprep.subr.mxu0 0.0
        %1340 = vmatpush2.msra.mxu0 0.0
        %1341 = vmatprep.subr.mxu0 0.0
        %1342 = vmatpush2.msra.mxu0 0.0
        %1343 = vmatprep.subr.mxu0 0.0
        %1344 = vmatpush2.msra.mxu0 0.0
        %1345 = vmatprep.subr.mxu0 0.0
        %1346 = vmatpush2.msra.mxu0 0.0
        %1347 = vmatprep.subr.mxu0 0.0
        %1348 = vmatpush2.msra.mxu0 0.0
        %1349 = vmatprep.subr.mxu0 0.0
        %1350 = vmatpush2.msra.mxu0 0.0
        %1351 = vmatprep.subr.mxu0 0.0
        %1352 = vmatpush2.msra.mxu0 0.0
        %1353 = vmatprep.subr.mxu0 0.0
        %1354 = vmatpush2.msra.mxu0 0.0
        %1355 = vmatprep.subr.mxu0 0.0
        %1356 = vmatpush2.msra.mxu0 0.0
        %1357 = vmatprep.subr.mxu0 0.0
        %1358 = vmatpush2.msra.mxu0 0.0
        %1359 = vmatprep.subr.mxu0 0.0
        %1360 = vmatpush2.msra.mxu0 0.0
        %1361 = vmatprep.subr.mxu0 0.0
        %1362 = vmatpush2.msra.mxu0 0.0
        %1363 = vmatprep.subr.mxu0 0.0
        %1364 = vmatpush2.msra.mxu0 0.0
        %1365 = vmatprep.subr.mxu0 0.0
        %1366 = vmatpush2.msra.mxu0 0.0
        %1367 = vmatprep.mubr.f32.mxu0 0.0
        %1368 = vmatmul.mubr.f32.gmra.mxu0 %v1301
        %v1369 = vpop.f32.mrf.mxu0
        %v1370 = vadd.f32 0.0, %v1369
        %v1371 = vpop.f32.mrf.mxu0
        %1372 = vdwg.mxu0
        %1373 = vrot.lane.b32.xlu0 %v453, 48
        %v1374 = vpop.permute.xlu0 %1373
        %v1377 = vsel %vm461, %v1296, 0
        %1379 = vmatprep.subr.mxu0 0.0
        %1380 = vmatpush1.msra.mxu0 0.0
        %1381 = vmatprep.subr.mxu0 0.0
        %1382 = vmatpush1.msra.mxu0 0.0
        %1383 = vmatprep.subr.mxu0 0.0
        %1384 = vmatpush1.msra.mxu0 0.0
        %1385 = vmatprep.subr.mxu0 0.0
        %1386 = vmatpush1.msra.mxu0 0.0
        %1387 = vmatprep.subr.mxu0 0.0
        %1388 = vmatpush1.msra.mxu0 0.0
        %1389 = vmatprep.subr.mxu0 0.0
        %1390 = vmatpush1.msra.mxu0 0.0
        %1391 = vmatprep.subr.mxu0 0.0
        %1392 = vmatpush1.msra.mxu0 0.0
        %1393 = vmatprep.subr.mxu0 0.0
        %1394 = vmatpush1.msra.mxu0 0.0
        %1395 = vmatprep.subr.mxu0 0.0
        %1396 = vmatpush1.msra.mxu0 0.0
        %1397 = vmatprep.subr.mxu0 0.0
        %1398 = vmatpush1.msra.mxu0 0.0
        %1399 = vmatprep.subr.mxu0 0.0
        %1400 = vmatpush1.msra.mxu0 0.0
        %1401 = vmatprep.subr.mxu0 0.0
        %1402 = vmatpush1.msra.mxu0 0.0
        %1403 = vmatprep.subr.mxu0 0.0
        %1404 = vmatpush1.msra.mxu0 0.0
        %1405 = vmatprep.subr.mxu0 0.0
        %1406 = vmatpush1.msra.mxu0 0.0
        %1407 = vmatprep.subr.mxu0 0.0
        %1408 = vmatpush1.msra.mxu0 0.0
        %1409 = vmatprep.subr.mxu0 0.0
        %1410 = vmatpush1.msra.mxu0 %v1374
        %1411 = vmatprep.subr.mxu0 0.0
        %1412 = vmatpush2.msra.mxu0 0.0
        %1413 = vmatprep.subr.mxu0 0.0
        %1414 = vmatpush2.msra.mxu0 0.0
        %1415 = vmatprep.subr.mxu0 0.0
        %1416 = vmatpush2.msra.mxu0 0.0
        %1417 = vmatprep.subr.mxu0 0.0
        %1418 = vmatpush2.msra.mxu0 0.0
        %1419 = vmatprep.subr.mxu0 0.0
        %1420 = vmatpush2.msra.mxu0 0.0
        %1421 = vmatprep.subr.mxu0 0.0
        %1422 = vmatpush2.msra.mxu0 0.0
        %1423 = vmatprep.subr.mxu0 0.0
        %1424 = vmatpush2.msra.mxu0 0.0
        %1425 = vmatprep.subr.mxu0 0.0
        %1426 = vmatpush2.msra.mxu0 0.0
        %1427 = vmatprep.subr.mxu0 0.0
        %1428 = vmatpush2.msra.mxu0 0.0
        %1429 = vmatprep.subr.mxu0 0.0
        %1430 = vmatpush2.msra.mxu0 0.0
        %1431 = vmatprep.subr.mxu0 0.0
        %1432 = vmatpush2.msra.mxu0 0.0
        %1433 = vmatprep.subr.mxu0 0.0
        %1434 = vmatpush2.msra.mxu0 0.0
        %1435 = vmatprep.subr.mxu0 0.0
        %1436 = vmatpush2.msra.mxu0 0.0
        %1437 = vmatprep.subr.mxu0 0.0
        %1438 = vmatpush2.msra.mxu0 0.0
        %1439 = vmatprep.subr.mxu0 0.0
        %1440 = vmatpush2.msra.mxu0 0.0
        %1441 = vmatprep.subr.mxu0 0.0
        %1442 = vmatpush2.msra.mxu0 0.0
        %1443 = vmatprep.mubr.f32.mxu0 0.0
        %1444 = vmatmul.mubr.f32.gmra.mxu0 %v1377
        %v1445 = vpop.f32.mrf.mxu0
        %v1446 = vadd.f32 0.0, %v1445
        %v1447 = vpop.f32.mrf.mxu0
        %1448 = vdwg.mxu0
        %1449 = vrot.lane.b32.xlu0 %v456, 104
        %v1450 = vpop.permute.xlu0 %1449
        %1451 = vrot.lane.b32.xlu0 %v450, 72
        %v1452 = vpop.permute.xlu0 %1451
        %v1453 = vsel %vm461, %v1450, 0
        %v1455 = vsel %vm461, %v1452, 0
        %1457 = vmatprep.subr.mxu0 0.0
        %1458 = vmatpush1.xpose.msra.mxu0 0.0
        %1459 = vmatprep.subr.mxu0 0.0
        %1460 = vmatpush1.xpose.msra.mxu0 0.0
        %1461 = vmatprep.subr.mxu0 0.0
        %1462 = vmatpush1.xpose.msra.mxu0 0.0
        %1463 = vmatprep.subr.mxu0 0.0
        %1464 = vmatpush1.xpose.msra.mxu0 0.0
        %1465 = vmatprep.subr.mxu0 0.0
        %1466 = vmatpush1.xpose.msra.mxu0 0.0
        %1467 = vmatprep.subr.mxu0 0.0
        %1468 = vmatpush1.xpose.msra.mxu0 0.0
        %1469 = vmatprep.subr.mxu0 0.0
        %1470 = vmatpush1.xpose.msra.mxu0 0.0
        %1471 = vmatprep.subr.mxu0 0.0
        %1472 = vmatpush1.xpose.msra.mxu0 0.0
        %1473 = vmatprep.subr.mxu0 0.0
        %1474 = vmatpush1.xpose.msra.mxu0 0.0
        %1475 = vmatprep.subr.mxu0 0.0
        %1476 = vmatpush1.xpose.msra.mxu0 0.0
        %1477 = vmatprep.subr.mxu0 0.0
        %1478 = vmatpush1.xpose.msra.mxu0 0.0
        %1479 = vmatprep.subr.mxu0 0.0
        %1480 = vmatpush1.xpose.msra.mxu0 0.0
        %1481 = vmatprep.subr.mxu0 0.0
        %1482 = vmatpush1.xpose.msra.mxu0 0.0
        %1483 = vmatprep.subr.mxu0 0.0
        %1484 = vmatpush1.xpose.msra.mxu0 0.0
        %1485 = vmatprep.subr.mxu0 0.0
        %1486 = vmatpush1.xpose.msra.mxu0 0.0
        %1487 = vmatprep.subr.mxu0 0.0
        %1488 = vmatpush1.xpose.msra.mxu0 %v1455
        %1489 = vmatprep.subr.mxu0 0.0
        %1490 = vmatpush2.xpose.msra.mxu0 0.0
        %1491 = vmatprep.subr.mxu0 0.0
        %1492 = vmatpush2.xpose.msra.mxu0 0.0
        %1493 = vmatprep.subr.mxu0 0.0
        %1494 = vmatpush2.xpose.msra.mxu0 0.0
        %1495 = vmatprep.subr.mxu0 0.0
        %1496 = vmatpush2.xpose.msra.mxu0 0.0
        %1497 = vmatprep.subr.mxu0 0.0
        %1498 = vmatpush2.xpose.msra.mxu0 0.0
        %1499 = vmatprep.subr.mxu0 0.0
        %1500 = vmatpush2.xpose.msra.mxu0 0.0
        %1501 = vmatprep.subr.mxu0 0.0
        %1502 = vmatpush2.xpose.msra.mxu0 0.0
        %1503 = vmatprep.subr.mxu0 0.0
        %1504 = vmatpush2.xpose.msra.mxu0 0.0
        %1505 = vmatprep.subr.mxu0 0.0
        %1506 = vmatpush2.xpose.msra.mxu0 0.0
        %1507 = vmatprep.subr.mxu0 0.0
        %1508 = vmatpush2.xpose.msra.mxu0 0.0
        %1509 = vmatprep.subr.mxu0 0.0
        %1510 = vmatpush2.xpose.msra.mxu0 0.0
        %1511 = vmatprep.subr.mxu0 0.0
        %1512 = vmatpush2.xpose.msra.mxu0 0.0
        %1513 = vmatprep.subr.mxu0 0.0
        %1514 = vmatpush2.xpose.msra.mxu0 0.0
        %1515 = vmatprep.subr.mxu0 0.0
        %1516 = vmatpush2.xpose.msra.mxu0 0.0
        %1517 = vmatprep.subr.mxu0 0.0
        %1518 = vmatpush2.xpose.msra.mxu0 0.0
        %1519 = vmatprep.subr.mxu0 0.0
        %1520 = vmatpush2.xpose.msra.mxu0 0.0
        %1521 = vmatprep.mubr.f32.mxu0 0.0
        %1522 = vmatmul.mubr.f32.gmra.mxu0 %v1453
        %v1523 = vpop.f32.mrf.mxu0
        %v1524 = vadd.f32 0.0, %v1523
        %v1525 = vpop.f32.mrf.mxu0
        %1526 = vdwg.mxu0
        %1527 = vrot.lane.b32.xlu0 %v457, 104
        %v1528 = vpop.permute.xlu0 %1527
        %1529 = vrot.lane.b32.xlu0 %v453, 72
        %v1530 = vpop.permute.xlu0 %1529
        %v1531 = vsel %vm461, %v1528, 0
        %v1533 = vsel %vm461, %v1530, 0
        %1535 = vmatprep.subr.mxu0 0.0
        %1536 = vmatpush1.xpose.msra.mxu0 0.0
        %1537 = vmatprep.subr.mxu0 0.0
        %1538 = vmatpush1.xpose.msra.mxu0 0.0
        %1539 = vmatprep.subr.mxu0 0.0
        %1540 = vmatpush1.xpose.msra.mxu0 0.0
        %1541 = vmatprep.subr.mxu0 0.0
        %1542 = vmatpush1.xpose.msra.mxu0 0.0
        %1543 = vmatprep.subr.mxu0 0.0
        %1544 = vmatpush1.xpose.msra.mxu0 0.0
        %1545 = vmatprep.subr.mxu0 0.0
        %1546 = vmatpush1.xpose.msra.mxu0 0.0
        %1547 = vmatprep.subr.mxu0 0.0
        %1548 = vmatpush1.xpose.msra.mxu0 0.0
        %1549 = vmatprep.subr.mxu0 0.0
        %1550 = vmatpush1.xpose.msra.mxu0 0.0
        %1551 = vmatprep.subr.mxu0 0.0
        %1552 = vmatpush1.xpose.msra.mxu0 0.0
        %1553 = vmatprep.subr.mxu0 0.0
        %1554 = vmatpush1.xpose.msra.mxu0 0.0
        %1555 = vmatprep.subr.mxu0 0.0
        %1556 = vmatpush1.xpose.msra.mxu0 0.0
        %1557 = vmatprep.subr.mxu0 0.0
        %1558 = vmatpush1.xpose.msra.mxu0 0.0
        %1559 = vmatprep.subr.mxu0 0.0
        %1560 = vmatpush1.xpose.msra.mxu0 0.0
        %1561 = vmatprep.subr.mxu0 0.0
        %1562 = vmatpush1.xpose.msra.mxu0 0.0
        %1563 = vmatprep.subr.mxu0 0.0
        %1564 = vmatpush1.xpose.msra.mxu0 0.0
        %1565 = vmatprep.subr.mxu0 0.0
        %1566 = vmatpush1.xpose.msra.mxu0 %v1533
        %1567 = vmatprep.subr.mxu0 0.0
        %1568 = vmatpush2.xpose.msra.mxu0 0.0
        %1569 = vmatprep.subr.mxu0 0.0
        %1570 = vmatpush2.xpose.msra.mxu0 0.0
        %1571 = vmatprep.subr.mxu0 0.0
        %1572 = vmatpush2.xpose.msra.mxu0 0.0
        %1573 = vmatprep.subr.mxu0 0.0
        %1574 = vmatpush2.xpose.msra.mxu0 0.0
        %1575 = vmatprep.subr.mxu0 0.0
        %1576 = vmatpush2.xpose.msra.mxu0 0.0
        %1577 = vmatprep.subr.mxu0 0.0
        %1578 = vmatpush2.xpose.msra.mxu0 0.0
        %1579 = vmatprep.subr.mxu0 0.0
        %1580 = vmatpush2.xpose.msra.mxu0 0.0
        %1581 = vmatprep.subr.mxu0 0.0
        %1582 = vmatpush2.xpose.msra.mxu0 0.0
        %1583 = vmatprep.subr.mxu0 0.0
        %1584 = vmatpush2.xpose.msra.mxu0 0.0
        %1585 = vmatprep.subr.mxu0 0.0
        %1586 = vmatpush2.xpose.msra.mxu0 0.0
        %1587 = vmatprep.subr.mxu0 0.0
        %1588 = vmatpush2.xpose.msra.mxu0 0.0
        %1589 = vmatprep.subr.mxu0 0.0
        %1590 = vmatpush2.xpose.msra.mxu0 0.0
        %1591 = vmatprep.subr.mxu0 0.0
        %1592 = vmatpush2.xpose.msra.mxu0 0.0
        %1593 = vmatprep.subr.mxu0 0.0
        %1594 = vmatpush2.xpose.msra.mxu0 0.0
        %1595 = vmatprep.subr.mxu0 0.0
        %1596 = vmatpush2.xpose.msra.mxu0 0.0
        %1597 = vmatprep.subr.mxu0 0.0
        %1598 = vmatpush2.xpose.msra.mxu0 0.0
        %1599 = vmatprep.mubr.f32.mxu0 0.0
        %1600 = vmatmul.mubr.f32.gmra.mxu0 %v1531
        %v1601 = vpop.f32.mrf.mxu0
        %v1602 = vadd.f32 0.0, %v1601
        %v1603 = vpop.f32.mrf.mxu0
        %1604 = vdwg.mxu0
        %v1605 = vsel %vm461, %v1524, -inf
        %1606 = vmax.xlane.f32.xlu0 %v1605
        %v1607 = vpop.xlane.xlu0 %1606
        %v1608 = vsel %vm461, %v1602, -inf
        %1609 = vmax.xlane.f32.xlu0 %v1608
        %v1610 = vpop.xlane.xlu0 %1609
        %v1611 = vsub.f32 %v1524, %v1607
        %v1612 = vsub.f32 %v1602, %v1610
        %v1613 = vmul.f32 %v1611, 1.442695
        %v1614 = vpow.pop %v1613
        %v1615 = vmul.f32 %v1612, 1.442695
        %v1616 = vpow.pop %v1615
        %v1617 = vsel %vm461, %v1614, 0.0
        %1618 = vadd.xlane.f32.xlu0 %v1617
        %v1619 = vpop.xlane.xlu0 %1618
        %v1620 = vsel %vm461, %v1616, 0.0
        %1621 = vadd.xlane.f32.xlu0 %v1620
        %v1622 = vpop.xlane.xlu0 %1621
        %v1623 = vrcp.pop %v1619
        %v1624 = vmul.f32 %v1614, %v1623
        %v1625 = vrcp.pop %v1622
        %v1626 = vmul.f32 %v1616, %v1625
        %1627 = vrot.lane.b32.xlu0 %v450, 40
        %v1628 = vpop.permute.xlu0 %1627
        %v1631 = vsel %vm461, %v1624, 0
        %1633 = vmatprep.subr.mxu0 0.0
        %1634 = vmatpush1.msra.mxu0 0.0
        %1635 = vmatprep.subr.mxu0 0.0
        %1636 = vmatpush1.msra.mxu0 0.0
        %1637 = vmatprep.subr.mxu0 0.0
        %1638 = vmatpush1.msra.mxu0 0.0
        %1639 = vmatprep.subr.mxu0 0.0
        %1640 = vmatpush1.msra.mxu0 0.0
        %1641 = vmatprep.subr.mxu0 0.0
        %1642 = vmatpush1.msra.mxu0 0.0
        %1643 = vmatprep.subr.mxu0 0.0
        %1644 = vmatpush1.msra.mxu0 0.0
        %1645 = vmatprep.subr.mxu0 0.0
        %1646 = vmatpush1.msra.mxu0 0.0
        %1647 = vmatprep.subr.mxu0 0.0
        %1648 = vmatpush1.msra.mxu0 0.0
        %1649 = vmatprep.subr.mxu0 0.0
        %1650 = vmatpush1.msra.mxu0 0.0
        %1651 = vmatprep.subr.mxu0 0.0
        %1652 = vmatpush1.msra.mxu0 0.0
        %1653 = vmatprep.subr.mxu0 0.0
        %1654 = vmatpush1.msra.mxu0 0.0
        %1655 = vmatprep.subr.mxu0 0.0
        %1656 = vmatpush1.msra.mxu0 0.0
        %1657 = vmatprep.subr.mxu0 0.0
        %1658 = vmatpush1.msra.mxu0 0.0
        %1659 = vmatprep.subr.mxu0 0.0
        %1660 = vmatpush1.msra.mxu0 0.0
        %1661 = vmatprep.subr.mxu0 0.0
        %1662 = vmatpush1.msra.mxu0 0.0
        %1663 = vmatprep.subr.mxu0 0.0
        %1664 = vmatpush1.msra.mxu0 %v1628
        %1665 = vmatprep.subr.mxu0 0.0
        %1666 = vmatpush2.msra.mxu0 0.0
        %1667 = vmatprep.subr.mxu0 0.0
        %1668 = vmatpush2.msra.mxu0 0.0
        %1669 = vmatprep.subr.mxu0 0.0
        %1670 = vmatpush2.msra.mxu0 0.0
        %1671 = vmatprep.subr.mxu0 0.0
        %1672 = vmatpush2.msra.mxu0 0.0
        %1673 = vmatprep.subr.mxu0 0.0
        %1674 = vmatpush2.msra.mxu0 0.0
        %1675 = vmatprep.subr.mxu0 0.0
        %1676 = vmatpush2.msra.mxu0 0.0
        %1677 = vmatprep.subr.mxu0 0.0
        %1678 = vmatpush2.msra.mxu0 0.0
        %1679 = vmatprep.subr.mxu0 0.0
        %1680 = vmatpush2.msra.mxu0 0.0
        %1681 = vmatprep.subr.mxu0 0.0
        %1682 = vmatpush2.msra.mxu0 0.0
        %1683 = vmatprep.subr.mxu0 0.0
        %1684 = vmatpush2.msra.mxu0 0.0
        %1685 = vmatprep.subr.mxu0 0.0
        %1686 = vmatpush2.msra.mxu0 0.0
        %1687 = vmatprep.subr.mxu0 0.0
        %1688 = vmatpush2.msra.mxu0 0.0
        %1689 = vmatprep.subr.mxu0 0.0
        %1690 = vmatpush2.msra.mxu0 0.0
        %1691 = vmatprep.subr.mxu0 0.0
        %1692 = vmatpush2.msra.mxu0 0.0
        %1693 = vmatprep.subr.mxu0 0.0
        %1694 = vmatpush2.msra.mxu0 0.0
        %1695 = vmatprep.subr.mxu0 0.0
        %1696 = vmatpush2.msra.mxu0 0.0
        %1697 = vmatprep.mubr.f32.mxu0 0.0
        %1698 = vmatmul.mubr.f32.gmra.mxu0 %v1631
        %v1699 = vpop.f32.mrf.mxu0
        %v1700 = vadd.f32 0.0, %v1699
        %v1701 = vpop.f32.mrf.mxu0
        %1702 = vdwg.mxu0
        %1703 = vrot.lane.b32.xlu0 %v453, 40
        %v1704 = vpop.permute.xlu0 %1703
        %v1707 = vsel %vm461, %v1626, 0
        %1709 = vmatprep.subr.mxu0 0.0
        %1710 = vmatpush1.msra.mxu0 0.0
        %1711 = vmatprep.subr.mxu0 0.0
        %1712 = vmatpush1.msra.mxu0 0.0
        %1713 = vmatprep.subr.mxu0 0.0
        %1714 = vmatpush1.msra.mxu0 0.0
        %1715 = vmatprep.subr.mxu0 0.0
        %1716 = vmatpush1.msra.mxu0 0.0
        %1717 = vmatprep.subr.mxu0 0.0
        %1718 = vmatpush1.msra.mxu0 0.0
        %1719 = vmatprep.subr.mxu0 0.0
        %1720 = vmatpush1.msra.mxu0 0.0
        %1721 = vmatprep.subr.mxu0 0.0
        %1722 = vmatpush1.msra.mxu0 0.0
        %1723 = vmatprep.subr.mxu0 0.0
        %1724 = vmatpush1.msra.mxu0 0.0
        %1725 = vmatprep.subr.mxu0 0.0
        %1726 = vmatpush1.msra.mxu0 0.0
        %1727 = vmatprep.subr.mxu0 0.0
        %1728 = vmatpush1.msra.mxu0 0.0
        %1729 = vmatprep.subr.mxu0 0.0
        %1730 = vmatpush1.msra.mxu0 0.0
        %1731 = vmatprep.subr.mxu0 0.0
        %1732 = vmatpush1.msra.mxu0 0.0
        %1733 = vmatprep.subr.mxu0 0.0
        %1734 = vmatpush1.msra.mxu0 0.0
        %1735 = vmatprep.subr.mxu0 0.0
        %1736 = vmatpush1.msra.mxu0 0.0
        %1737 = vmatprep.subr.mxu0 0.0
        %1738 = vmatpush1.msra.mxu0 0.0
        %1739 = vmatprep.subr.mxu0 0.0
        %1740 = vmatpush1.msra.mxu0 %v1704
        %1741 = vmatprep.subr.mxu0 0.0
        %1742 = vmatpush2.msra.mxu0 0.0
        %1743 = vmatprep.subr.mxu0 0.0
        %1744 = vmatpush2.msra.mxu0 0.0
        %1745 = vmatprep.subr.mxu0 0.0
        %1746 = vmatpush2.msra.mxu0 0.0
        %1747 = vmatprep.subr.mxu0 0.0
        %1748 = vmatpush2.msra.mxu0 0.0
        %1749 = vmatprep.subr.mxu0 0.0
        %1750 = vmatpush2.msra.mxu0 0.0
        %1751 = vmatprep.subr.mxu0 0.0
        %1752 = vmatpush2.msra.mxu0 0.0
        %1753 = vmatprep.subr.mxu0 0.0
        %1754 = vmatpush2.msra.mxu0 0.0
        %1755 = vmatprep.subr.mxu0 0.0
        %1756 = vmatpush2.msra.mxu0 0.0
        %1757 = vmatprep.subr.mxu0 0.0
        %1758 = vmatpush2.msra.mxu0 0.0
        %1759 = vmatprep.subr.mxu0 0.0
        %1760 = vmatpush2.msra.mxu0 0.0
        %1761 = vmatprep.subr.mxu0 0.0
        %1762 = vmatpush2.msra.mxu0 0.0
        %1763 = vmatprep.subr.mxu0 0.0
        %1764 = vmatpush2.msra.mxu0 0.0
        %1765 = vmatprep.subr.mxu0 0.0
        %1766 = vmatpush2.msra.mxu0 0.0
        %1767 = vmatprep.subr.mxu0 0.0
        %1768 = vmatpush2.msra.mxu0 0.0
        %1769 = vmatprep.subr.mxu0 0.0
        %1770 = vmatpush2.msra.mxu0 0.0
        %1771 = vmatprep.subr.mxu0 0.0
        %1772 = vmatpush2.msra.mxu0 0.0
        %1773 = vmatprep.mubr.f32.mxu0 0.0
        %1774 = vmatmul.mubr.f32.gmra.mxu0 %v1707
        %v1775 = vpop.f32.mrf.mxu0
        %v1776 = vadd.f32 0.0, %v1775
        %v1777 = vpop.f32.mrf.mxu0
        %1778 = vdwg.mxu0
        %1781 = vrot.lane.b32.xlu0 %v1040, 8
        %v1782 = vpop.permute.xlu0 %1781
        %1783 = vrot.lane.b32.xlu0 %v1116, 8
        %v1784 = vpop.permute.xlu0 %1783
        %1789 = vrot.lane.b32.xlu0 %v1370, 16
        %v1790 = vpop.permute.xlu0 %1789
        %1791 = vrot.lane.b32.xlu0 %v1446, 16
        %v1792 = vpop.permute.xlu0 %1791
        %1797 = vrot.lane.b32.xlu0 %v1700, 24
        %v1798 = vpop.permute.xlu0 %1797
        %1799 = vrot.lane.b32.xlu0 %v1776, 24
        %v1800 = vpop.permute.xlu0 %1799
        %v1803 = vsel %vm461, %v710, %v1782
        %v1804 = vsel %vm461, %v786, %v1784
        %vm1805 = vcmask 130048
        %v1806 = vsel %vm1805, %v1803, %v1790
        %v1807 = vsel %vm1805, %v1804, %v1792
        %vm1808 = vcmask 195584
        %v1809 = vsel %vm1808, %v1806, %v1798
        %v1810 = vsel %vm1808, %v1807, %v1800
        %v1811 = vpack.c.bf16 %v1810, %v1809
        %v1812 = vld [vmem:[%s365] sm:$0xf]
        %v1813 = vld [vmem:[%s365 + $0x4] sm:$0xf]
        %v1814 = vld [vmem:[%s365 + $0x8] sm:$0xf]
        %v1815 = vld [vmem:[%s365 + $0xc] sm:$0xf]
        %v1816 = vlaneseq
        %v1817 = vshrl.u32 %v1816, 7
        %v1818 = vsub.s32 2, %v1817
        %v1819 = vrot.slane %v389, %v1818
        %v1824 = vunpack.c.l.b16 %v1812
        %v1825 = vunpack.c.l.b16 %v1813
        %v1826 = vunpack.c.l.b16 %v1814
        %v1827 = vunpack.c.l.b16 %v1815
        %v1828 = vpack.c.b16 %v1825, %v1824
        %v1829 = vpack.c.b16 %v1827, %v1826
        %v1833 = vsel %vm411, %v1811, 0
        %1835 = vmatprep.subr.bf16.mxu0 0
        %1836 = vmatpush1.bf16.msra.mxu0 0
        %1837 = vmatprep.subr.bf16.mxu0 0
        %1838 = vmatpush1.bf16.msra.mxu0 0
        %1839 = vmatprep.subr.bf16.mxu0 0
        %1840 = vmatpush1.bf16.msra.mxu0 0
        %1841 = vmatprep.subr.bf16.mxu0 0
        %1842 = vmatpush1.bf16.msra.mxu0 0
        %1843 = vmatprep.subr.bf16.mxu0 0
        %1844 = vmatpush1.bf16.msra.mxu0 0
        %1845 = vmatprep.subr.bf16.mxu0 0
        %1846 = vmatpush1.bf16.msra.mxu0 0
        %1847 = vmatprep.subr.bf16.mxu0 0
        %1848 = vmatpush1.bf16.msra.mxu0 %v1829
        %1849 = vmatprep.subr.bf16.mxu0 0
        %1850 = vmatpush1.bf16.msra.mxu0 %v1828
        %1851 = vmatprep.subr.bf16.mxu0 0
        %1852 = vmatpush2.bf16.msra.mxu0 0
        %1853 = vmatprep.subr.bf16.mxu0 0
        %1854 = vmatpush2.bf16.msra.mxu0 0
        %1855 = vmatprep.subr.bf16.mxu0 0
        %1856 = vmatpush2.bf16.msra.mxu0 0
        %1857 = vmatprep.subr.bf16.mxu0 0
        %1858 = vmatpush2.bf16.msra.mxu0 0
        %1859 = vmatprep.subr.bf16.mxu0 0
        %1860 = vmatpush2.bf16.msra.mxu0 0
        %1861 = vmatprep.subr.bf16.mxu0 0
        %1862 = vmatpush2.bf16.msra.mxu0 0
        %1863 = vmatprep.subr.bf16.mxu0 0
        %1864 = vmatpush2.bf16.msra.mxu0 0
        %1865 = vmatprep.subr.bf16.mxu0 0
        %1866 = vmatpush2.bf16.msra.mxu0 0
        %1867 = vmatprep.mubr.bf16.mxu0 0
        %1868 = vmatmul.mubr.bf16.gmra.mxu0 %v1833
        %v1869 = vpop.f32.mrf.mxu0
        %v1870 = vadd.f32 %v1819, %v1869
        %v1871 = vpop.f32.mrf.mxu0
        %v1872 = vpop.f32.mrf.mxu0
        %v1873 = vadd.f32 %v1819, %v1872
        %v1874 = vpop.f32.mrf.mxu0
        %1875 = vdwg.mxu0
        %v1876 = vadd.f32 %v387, %v1870
        %v1877 = vadd.f32 %v388, %v1873
        %v1878 = vsel %vm411, %v1876, 0.0
        %1879 = vadd.xlane.f32.xlu0 %v1878
        %v1880 = vpop.xlane.xlu0 %1879
        %v1881 = vsel %vm411, %v1877, 0.0
        %1882 = vadd.xlane.f32.xlu0 %v1881
        %v1883 = vpop.xlane.xlu0 %1882
        %v1884 = vrcp.pop 32.0
        %v1885 = vmul.f32 %v1880, %v1884
        %v1886 = vmul.f32 %v1883, %v1884
        %v1887 = vsub.f32 %v1876, %v1885
        %v1888 = vsub.f32 %v1877, %v1886
        %v1889 = vmul.f32 %v1887, %v1887
        %v1890 = vmul.f32 %v1888, %v1888
        %v1891 = vsel %vm411, %v1889, 0.0
        %1892 = vadd.xlane.f32.xlu0 %v1891
        %v1893 = vpop.xlane.xlu0 %1892
        %v1894 = vsel %vm411, %v1890, 0.0
        %1895 = vadd.xlane.f32.xlu0 %v1894
        %v1896 = vpop.xlane.xlu0 %1895
        %v1897 = vmul.f32 %v1893, %v1884
        %v1898 = vmul.f32 %v1896, %v1884
        %v1899 = vadd.f32 %v1897, 1e-05
        %v1900 = vadd.f32 %v1898, 1e-05
        %v1901 = vrsqrt.pop %v1899
        %v1902 = vrsqrt.pop %v1900
        %v1903 = vmul.f32 %v1887, %v1901
        %v1904 = vmul.f32 %v1888, %v1902
        %v1905 = vlaneseq
        %v1906 = vshrl.u32 %v1905, 7
        %v1907 = vsub.s32 3, %v1906
        %v1908 = vrot.slane %v389, %v1907
        %v1909 = vmul.f32 %v1903, %v1908
        %v1910 = vmul.f32 %v1904, %v1908
        %v1911 = vlaneseq
        %v1912 = vshrl.u32 %v1911, 7
        %v1913 = vsub.s32 4, %v1912
        %v1914 = vrot.slane %v389, %v1913
        %v1915 = vadd.f32 %v1909, %v1914
        %v1916 = vadd.f32 %v1910, %v1914
        %v1917 = vpack.c.bf16 %v1916, %v1915
        %v1918 = vld [vmem:[%s370] sm:$0xf]
        %v1919 = vld [vmem:[%s370 + $0x4] sm:$0xf]
        %v1920 = vld [vmem:[%s370 + $0x8] sm:$0xf]
        %v1921 = vld [vmem:[%s370 + $0xc] sm:$0xf]
        %v1922 = vlaneseq
        %v1923 = vshrl.u32 %v1922, 7
        %v1924 = vsub.s32 1, %v1923
        %v1925 = vrot.slane %v389, %v1924
        %v1930 = vunpack.c.l.b16 %v1918
        %v1931 = vunpack.c.l.b16 %v1919
        %v1932 = vunpack.c.l.b16 %v1920
        %v1933 = vunpack.c.l.b16 %v1921
        %v1934 = vpack.c.b16 %v1931, %v1930
        %v1935 = vpack.c.b16 %v1933, %v1932
        %v1939 = vsel %vm411, %v1917, 0
        %1941 = vmatprep.subr.bf16.mxu0 0
        %1942 = vmatpush1.bf16.msra.mxu0 0
        %1943 = vmatprep.subr.bf16.mxu0 0
        %1944 = vmatpush1.bf16.msra.mxu0 0
        %1945 = vmatprep.subr.bf16.mxu0 0
        %1946 = vmatpush1.bf16.msra.mxu0 0
        %1947 = vmatprep.subr.bf16.mxu0 0
        %1948 = vmatpush1.bf16.msra.mxu0 0
        %1949 = vmatprep.subr.bf16.mxu0 0
        %1950 = vmatpush1.bf16.msra.mxu0 0
        %1951 = vmatprep.subr.bf16.mxu0 0
        %1952 = vmatpush1.bf16.msra.mxu0 0
        %1953 = vmatprep.subr.bf16.mxu0 0
        %1954 = vmatpush1.bf16.msra.mxu0 %v1935
        %1955 = vmatprep.subr.bf16.mxu0 0
        %1956 = vmatpush1.bf16.msra.mxu0 %v1934
        %1957 = vmatprep.subr.bf16.mxu0 0
        %1958 = vmatpush2.bf16.msra.mxu0 0
        %1959 = vmatprep.subr.bf16.mxu0 0
        %1960 = vmatpush2.bf16.msra.mxu0 0
        %1961 = vmatprep.subr.bf16.mxu0 0
        %1962 = vmatpush2.bf16.msra.mxu0 0
        %1963 = vmatprep.subr.bf16.mxu0 0
        %1964 = vmatpush2.bf16.msra.mxu0 0
        %1965 = vmatprep.subr.bf16.mxu0 0
        %1966 = vmatpush2.bf16.msra.mxu0 0
        %1967 = vmatprep.subr.bf16.mxu0 0
        %1968 = vmatpush2.bf16.msra.mxu0 0
        %1969 = vmatprep.subr.bf16.mxu0 0
        %1970 = vmatpush2.bf16.msra.mxu0 0
        %1971 = vmatprep.subr.bf16.mxu0 0
        %1972 = vmatpush2.bf16.msra.mxu0 0
        %1973 = vmatprep.mubr.bf16.mxu0 0
        %1974 = vmatmul.mubr.bf16.gmra.mxu0 %v1939
        %v1975 = vpop.f32.mrf.mxu0
        %v1976 = vadd.f32 %v1925, %v1975
        %v1977 = vpop.f32.mrf.mxu0
        %v1978 = vpop.f32.mrf.mxu0
        %v1979 = vadd.f32 %v1925, %v1978
        %v1980 = vpop.f32.mrf.mxu0
        %1981 = vdwg.mxu0
        %v1982 = vmax.f32 %v1976, 0.0
        %v1983 = vmax.f32 %v1979, 0.0
        %v1984 = vpack.c.bf16 %v1983, %v1982
        %v1985 = vld [vmem:[%s375] sm:$0xf]
        %v1986 = vld [vmem:[%s375 + $0x4] sm:$0xf]
        %v1987 = vld [vmem:[%s375 + $0x8] sm:$0xf]
        %v1988 = vld [vmem:[%s375 + $0xc] sm:$0xf]
        %v1989 = vld [vmem:[%s375 + $0x10] sm:$0xf]
        %v1990 = vld [vmem:[%s375 + $0x14] sm:$0xf]
        %v1991 = vld [vmem:[%s375 + $0x18] sm:$0xf]
        %v1992 = vld [vmem:[%s375 + $0x1c] sm:$0xf]
        %v1993 = vlaneseq
        %v1994 = vshrl.u32 %v1993, 7
        %v1995 = vsub.s32 5, %v1994
        %v1996 = vrot.slane %v389, %v1995
        %v2005 = vunpack.c.l.b16 %v1985
        %v2006 = vunpack.c.l.b16 %v1986
        %v2007 = vunpack.c.l.b16 %v1987
        %v2008 = vunpack.c.l.b16 %v1988
        %v2009 = vunpack.c.l.b16 %v1989
        %v2010 = vunpack.c.l.b16 %v1990
        %v2011 = vunpack.c.l.b16 %v1991
        %v2012 = vunpack.c.l.b16 %v1992
        %v2013 = vpack.c.b16 %v2006, %v2005
        %v2014 = vpack.c.b16 %v2008, %v2007
        %v2015 = vpack.c.b16 %v2010, %v2009
        %v2016 = vpack.c.b16 %v2012, %v2011
        %vm2021 = vcmask 523264
        %v2023 = vsel %vm2021, %v1984, 0
        %2025 = vmatprep.subr.bf16.mxu0 0
        %2026 = vmatpush1.bf16.msra.mxu0 0
        %2027 = vmatprep.subr.bf16.mxu0 0
        %2028 = vmatpush1.bf16.msra.mxu0 0
        %2029 = vmatprep.subr.bf16.mxu0 0
        %2030 = vmatpush1.bf16.msra.mxu0 0
        %2031 = vmatprep.subr.bf16.mxu0 0
        %2032 = vmatpush1.bf16.msra.mxu0 0
        %2033 = vmatprep.subr.bf16.mxu0 0
        %2034 = vmatpush1.bf16.msra.mxu0 %v2016
        %2035 = vmatprep.subr.bf16.mxu0 0
        %2036 = vmatpush1.bf16.msra.mxu0 %v2015
        %2037 = vmatprep.subr.bf16.mxu0 0
        %2038 = vmatpush1.bf16.msra.mxu0 %v2014
        %2039 = vmatprep.subr.bf16.mxu0 0
        %2040 = vmatpush1.bf16.msra.mxu0 %v2013
        %2041 = vmatprep.subr.bf16.mxu0 0
        %2042 = vmatpush2.bf16.msra.mxu0 0
        %2043 = vmatprep.subr.bf16.mxu0 0
        %2044 = vmatpush2.bf16.msra.mxu0 0
        %2045 = vmatprep.subr.bf16.mxu0 0
        %2046 = vmatpush2.bf16.msra.mxu0 0
        %2047 = vmatprep.subr.bf16.mxu0 0
        %2048 = vmatpush2.bf16.msra.mxu0 0
        %2049 = vmatprep.subr.bf16.mxu0 0
        %2050 = vmatpush2.bf16.msra.mxu0 0
        %2051 = vmatprep.subr.bf16.mxu0 0
        %2052 = vmatpush2.bf16.msra.mxu0 0
        %2053 = vmatprep.subr.bf16.mxu0 0
        %2054 = vmatpush2.bf16.msra.mxu0 0
        %2055 = vmatprep.subr.bf16.mxu0 0
        %2056 = vmatpush2.bf16.msra.mxu0 0
        %2057 = vmatprep.mubr.bf16.mxu0 0
        %2058 = vmatmul.mubr.bf16.gmra.mxu0 %v2023
        %v2059 = vpop.f32.mrf.mxu0
        %v2060 = vadd.f32 %v1996, %v2059
        %v2061 = vpop.f32.mrf.mxu0
        %v2062 = vpop.f32.mrf.mxu0
        %v2063 = vadd.f32 %v1996, %v2062
        %v2064 = vpop.f32.mrf.mxu0
        %2065 = vdwg.mxu0
        %v2066 = vadd.f32 %v1915, %v2060
        %v2067 = vadd.f32 %v1916, %v2063
        %v2068 = vsel %vm411, %v2066, 0.0
        %2069 = vadd.xlane.f32.xlu0 %v2068
        %v2070 = vpop.xlane.xlu0 %2069
        %v2071 = vsel %vm411, %v2067, 0.0
        %2072 = vadd.xlane.f32.xlu0 %v2071
        %v2073 = vpop.xlane.xlu0 %2072
        %v2074 = vmul.f32 %v2070, %v1884
        %v2075 = vmul.f32 %v2073, %v1884
        %v2076 = vsub.f32 %v2066, %v2074
        %v2077 = vsub.f32 %v2067, %v2075
        %v2078 = vmul.f32 %v2076, %v2076
        %v2079 = vmul.f32 %v2077, %v2077
        %v2080 = vsel %vm411, %v2078, 0.0
        %2081 = vadd.xlane.f32.xlu0 %v2080
        %v2082 = vpop.xlane.xlu0 %2081
        %v2083 = vsel %vm411, %v2079, 0.0
        %2084 = vadd.xlane.f32.xlu0 %v2083
        %v2085 = vpop.xlane.xlu0 %2084
        %v2086 = vmul.f32 %v2082, %v1884
        %v2087 = vmul.f32 %v2085, %v1884
        %v2088 = vadd.f32 %v2086, 1e-05
        %v2089 = vadd.f32 %v2087, 1e-05
        %v2090 = vrsqrt.pop %v2088
        %v2091 = vrsqrt.pop %v2089
        %v2092 = vmul.f32 %v2076, %v2090
        %v2093 = vmul.f32 %v2077, %v2091
        %v2094 = vlaneseq
        %v2095 = vshrl.u32 %v2094, 7
        %v2096 = vsub.s32 6, %v2095
        %v2097 = vrot.slane %v389, %v2096
        %v2098 = vmul.f32 %v2092, %v2097
        %v2099 = vmul.f32 %v2093, %v2097
        %v2100 = vlaneseq
        %v2101 = vshrl.u32 %v2100, 7
        %v2102 = vsub.s32 7, %v2101
        %v2103 = vrot.slane %v389, %v2102
        %v2104 = vadd.f32 %v2098, %v2103
        %v2105 = vadd.f32 %v2099, %v2103
        %2106 = vst.msk [vmem:[#allocation2] sm:$0xff] %vm411, %v2104
        %2107 = vst.msk [vmem:[#allocation2 + $0x8] sm:$0xff] %vm411, %v2105
        %p2108 = scmp.eq.s32.totalorder %s27, 1
        // Predicated region
        $region57: #{tpu_custom_call.1} parent=43 // pred_check
          %p2109 = pneg %p2108
        $region58: #{tpu_custom_call.1} parent=43 // pred_check_branch
          %2111 = sbr.rel (%p2109) target = $region60
        $region59: #{tpu_custom_call.1} parent=43 // pred_region
          %2112 = vst.msk [vmem:[#allocation8] sm:$0xff] %vm411, %v2104
          %2113 = vst.msk [vmem:[#allocation8 + $0x8] sm:$0xff] %vm411, %v2105
        $region60: #{tpu_custom_call.1} parent=43 // pred_fallthru
          _
        // Predicated region
        $region61: #{tpu_custom_call.1} parent=43 // pred_check
          %p2114 = pneg %p208
        $region62: #{tpu_custom_call.1} parent=43 // pred_check_branch
          %2116 = sbr.rel (%p2114) target = $region64
        $region63: #{tpu_custom_call.1} parent=43 // pred_region
          %s2117 = smul.u32 2, %s26
          %s2119 = ssub.s32 256, 256
          %2120 = vsyncadd [#allocation5], %s2119
          %s2121 = smul.addr %s2117, 128
          %s2122 = scalar_lea.hbm %s6, %s2121
          %s2123 = sshll.u32 [#allocation8], 4
          %s2124 = int_to_ptr.vmem [resolvable:$true] %s2123
          %2129 = dma.vmem_to_hbm [thread:$0]  %s2124, 256, %s2122, [#allocation5], 128, 128, 8
        $region64: #{tpu_custom_call.1} parent=43 // pred_fallthru
          _
        // Predicated region
        $region65: #{tpu_custom_call.1} parent=43 // pred_check
          %p2130 = pneg %p208
        $region66: #{tpu_custom_call.1} parent=43 // pred_check_branch
          %2132 = sbr.rel (%p2130) target = $region68
        $region67: #{tpu_custom_call.1} parent=43 // pred_region
          %2133 = dma.done [#allocation5], 256
        $region68: #{tpu_custom_call.1} parent=43 // pred_fallthru
          _
      $region44: #{tpu_custom_call.1} parent=5 // pred_fallthru
        _
      %p2134 = scmp.le.s32.totalorder 2, %s17
      // Predicated region
      $region69: #{tpu_custom_call.1} parent=5 // pred_check
        %p2135 = pneg %p2134
      $region70: #{tpu_custom_call.1} parent=5 // pred_check_branch
        %2137 = sbr.rel (%p2135) target = $region72
      $region71: #{tpu_custom_call.1} parent=5 // pred_region
        %s2138 = ssub.s32 %s17, 2
      $region72: #{tpu_custom_call.1} parent=5 // pred_fallthru
        _
    $region6: #{tpu_custom_call.1} parent=1 // loop_footer
      %s21 = sadd.s32 1, %s17
    $region7: #{tpu_custom_call.1} parent=1 // loop_footer_branch
      %16 = sbr.rel target = $region3
    $region8: #{tpu_custom_call.1} parent=1 // loop_exit
      _
    %2139 = vsyncpa [#allocation4], 1
    %s2140 = scalar_lea.sflag [#allocation4], 1
    %2141 = vsyncpa %s2140, 1
    %2142 = vsyncpa [#allocation7], 1
    %s2143 = scalar_lea.sflag [#allocation7], 1
    %2144 = vsyncpa %s2143, 1
    %2145 = vsyncpa [#allocation5], 1
    %s2146 = scalar_lea.sflag [#allocation5], 1
    %2147 = vsyncpa %s2146, 1

</llo_original>
